<compile_context>
chip_gen: v7x
topology: tpu7x:2x2x1
jax: 0.10.0
libtpu: 0.0.40
codegen_flags: <defaults>
</compile_context>

<pallas_src>
import functools

import jax
import jax.numpy as jnp
import numpy as np
from jax import lax
from jax.experimental import pallas as pl
from jax.experimental.pallas import tpu as pltpu

K = 3      # kernel_size_l0 = kernel_size_l1 = 3   (spatial k x k x 1)
C_IN = 5   # input channels == final output channels
C_MID = 2  # n_filter_l1


# ----------------------------------------------------------------------------
# Fused kernel for one batch element n:
#   conv -> sig -> conv -> sig -> convT -> sig -> convT -> sig
# Data layout per channel: (D, H*W) slab; D on sublanes, lane = h*W + w.
# Valid data of layer L occupies sublanes [0, dv) and lanes [0, hv*W).
# Weights/biases live flat in SMEM, already pre-scaled by 0.5 and (for the
# transpose convs) flipped + channel-transposed on the host.
# ----------------------------------------------------------------------------
def _fused_autoencoder_kernel(x_ref, w1_ref, b1_ref, w2_ref, b2_ref,
                              w3_ref, b3_ref, w4_ref, b4_ref, o_ref,
                              *, d, hw, nh, hstride):
    shape = (d, hw)

    def sigmoid_half(v):
        # weights/biases carry the 0.5 pre-scale, so sigmoid(z) == 0.5*tanh(v)+0.5
        # with v = 0.5*z; keeps the nonlinearity fully on the EUP slot.
        return 0.5 * jnp.tanh(v) + 0.5

    def valid_mask(dv, hv_rows):
        # Built lazily, only for the two transpose-layer inputs.
        sub = lax.broadcasted_iota(jnp.int32, shape, 0)
        lane = lax.broadcasted_iota(jnp.int32, shape, 1)
        return (sub < dv) & (lane < hv_rows * hstride)

    def conv_layer(slabs, w_ref, b_ref, cin, cout, transpose):
        """One valid conv or (pre-zeroed-input) full conv == ConvTranspose layer."""
        # Accumulators start at the (pre-scaled) bias: saves a vadd per slab.
        accs = [jnp.full(shape, b_ref[co], jnp.float32) for co in range(cout)]
        for ci in range(cin):
            x_ci = slabs[ci]                              # load slab once per ci
            for di in range(K):
                if transpose:
                    # out[p] += w[di,dj] * x[p - s]; inputs are pre-zeroed outside
                    # their valid region, so rolled-in values are already the
                    # ConvTranspose zero padding -> no per-patch mask needed.
                    s_d = K - 1 - di
                    xd = pltpu.roll(x_ci, s_d, 0) if s_d else x_ci
                else:
                    # out[p] += w[di,dj] * x[p + s] (valid conv); valid outputs
                    # never read wrapped data, so no mask is needed.
                    xd = pltpu.roll(x_ci, d - di, 0) if di else x_ci
                for dj in range(K):
                    if transpose:
                        s_h = (K - 1 - dj) * hstride
                        patch = pltpu.roll(xd, s_h, 1) if s_h else xd
                    else:
                        s_h = dj * hstride
                        patch = pltpu.roll(xd, hw - s_h, 1) if s_h else xd
                    for co in range(cout):                # patch reused for all co
                        flat = ((co * cin + ci) * K + di) * K + dj
                        accs[co] = accs[co] + w_ref[flat] * patch
        return [sigmoid_half(accs[co]) for co in range(cout)]

    x0 = [x_ref[0, ci, :, :] for ci in range(C_IN)]
    h1 = conv_layer(x0, w1_ref, b1_ref, C_IN, 1, False)     # valid (d-2, nh-2)
    h2 = conv_layer(h1, w2_ref, b2_ref, 1, C_MID, False)    # valid (d-4, nh-4)

    # Pre-zero the invalid region once per channel (replaces 9 masks / channel).
    m2 = valid_mask(d - 4, nh - 4)
    h2 = [jnp.where(m2, t, 0.0) for t in h2]
    h3 = conv_layer(h2, w3_ref, b3_ref, C_MID, 1, True)      # valid (d-2, nh-2)

    m3 = valid_mask(d - 2, nh - 2)
    h3 = [jnp.where(m3, t, 0.0) for t in h3]
    h4 = conv_layer(h3, w4_ref, b4_ref, 1, C_IN, True)       # valid (d, nh)

    for co in range(C_IN):
        o_ref[0, co, :, :] = h4[co]                          # lane-dense stores


def _fused_forward(x_folded, kparams, *, nh, hstride):
    n, c, d, hw = x_folded.shape
    assert c == C_IN
    kernel = functools.partial(_fused_autoencoder_kernel,
                               d=d, hw=hw, nh=nh, hstride=hstride)
    smem = pl.BlockSpec(memory_space=pltpu.MemorySpace.SMEM)
    blk = pl.BlockSpec((1, C_IN, d, hw), lambda i: (i, 0, 0, 0))
    return pl.pallas_call(
        kernel,
        out_shape=jax.ShapeDtypeStruct((n, C_IN, d, hw), jnp.float32),
        grid=(n,),
        in_specs=[blk] + [smem] * len(kparams),
        out_specs=pl.BlockSpec((1, C_IN, d, hw), lambda i: (i, 0, 0, 0)),
        compiler_params=pltpu.CompilerParams(
            dimension_semantics=("parallel",)),   # v7x: both TCs take batch work
    )(x_folded, *kparams)


@jax.jit
def autoencoder_forward_pallas(x, kparams):
    """x: (N, 5, D, H, W) f32 -> (N, 5, D, H, W).  Layout fold is a free
    contiguous reshape (lane = h*W + w); no XLA transposes on either side."""
    n, c, d, h, w_axis = x.shape
    assert c == C_IN and d >= 2 * (K - 1) + 1 and h >= 2 * (K - 1) + 1
    # Pick H*W a multiple of 128 to keep stores unmasked lane-dense vst.
    x_folded = x.astype(jnp.float32).reshape(n, c, d, h * w_axis)
    out = _fused_forward(x_folded, kparams, nh=h, hstride=w_axis)
    return out.reshape(n, c, d, h, w_axis)


# ----------------------------------------------------------------------------
# Parameters (deterministic, matching the module's __init__ shapes) and the
# one-time host-side weight prep for the kernel.
# ----------------------------------------------------------------------------
def init_params(key):
    """Conv3d weights are (Cout, Cin, kD, kH, 1) -> stored squeezed (Cout, Cin, K, K);
    ConvTranspose3d weights are (Cin, Cout, kD, kH, 1) -> stored (Cin, Cout, K, K).
    Weights ~ N(0.5, 0.7) as in torch.nn.init.normal_(mean=0.5, std=0.7)."""
    ks = jax.random.split(key, 8)

    def w_init(k, shape):
        return 0.5 + 0.7 * jax.random.normal(k, shape, jnp.float32)

    def b_init(k, shape):
        return 0.1 * jax.random.normal(k, shape, jnp.float32)

    return {
        "down0_w": w_init(ks[0], (1, C_IN, K, K)),  "down0_b": b_init(ks[1], (1,)),
        "down1_w": w_init(ks[2], (C_MID, 1, K, K)), "down1_b": b_init(ks[3], (C_MID,)),
        "up0_w":   w_init(ks[4], (C_MID, 1, K, K)), "up0_b":   b_init(ks[5], (1,)),
        "up1_w":   w_init(ks[6], (1, C_IN, K, K)),  "up1_b":   b_init(ks[7], (C_IN,)),
    }


def prepare_kernel_params(params):
    """One-time prep (hoisted out of the forward): flatten conv weights, flip +
    channel-transpose the ConvTranspose weights into full-conv kernels, and fold
    the sigmoid 0.5 pre-scale into every weight and bias."""
    half = jnp.float32(0.5)

    def t_eff(w):  # (Cin, Cout, K, K) -> flat (Cout, Cin, K, K)
        return jnp.transpose(jnp.flip(w, axis=(2, 3)), (1, 0, 2, 3)).reshape(-1)

    return (
        half * params["down0_w"].reshape(-1), half * params["down0_b"],
        half * params["down1_w"].reshape(-1), half * params["down1_b"],
        half * t_eff(params["up0_w"]), half * params["up0_b"],
        half * t_eff(params["up1_w"]), half * params["up1_b"],
    )


# ----------------------------------------------------------------------------
# Pure-JAX reference (no Pallas) for a correctness check.
# ----------------------------------------------------------------------------
def _ref_conv_sigmoid(x, w, b):
    cout, _, kd, kh = w.shape
    din, hin = x.shape[2], x.shape[3]
    dout, hout = din - kd + 1, hin - kh + 1
    acc = jnp.zeros((x.shape[0], cout, dout, hout), jnp.float32)
    acc = acc + b[None, :, None, None]
    for di in range(kd):
        for dj in range(kh):
            patch = x[:, :, di:di + dout, dj:dj + hout]
            acc = acc + jnp.einsum('bchw,oc->bohw', patch, w[:, :, di, dj])
    return jax.nn.sigmoid(acc)


def _ref_conv_transpose_sigmoid(x, w, b):
    cin, cout, kd, kh = w.shape
    x_pad = jnp.pad(x, ((0, 0), (0, 0), (kd - 1, kd - 1), (kh - 1, kh - 1)))
    w_eff = jnp.transpose(jnp.flip(w, axis=(2, 3)), (1, 0, 2, 3))
    return _ref_conv_sigmoid(x_pad, w_eff, b)


@jax.jit
def autoencoder_forward_ref(x, params):
    n, c, d, h, w_axis = x.shape
    y = jnp.transpose(x.astype(jnp.float32), (0, 4, 1, 2, 3)).reshape(
        n * w_axis, c, d, h)
    y = _ref_conv_sigmoid(y, params["down0_w"], params["down0_b"])
    y = _ref_conv_sigmoid(y, params["down1_w"], params["down1_b"])
    y = _ref_conv_transpose_sigmoid(y, params["up0_w"], params["up0_b"])
    y = _ref_conv_transpose_sigmoid(y, params["up1_w"], params["up1_b"])
    _, c2, d2, h2 = y.shape
    return jnp.transpose(y.reshape(n, w_axis, c2, d2, h2), (0, 2, 3, 4, 1))


if __name__ == "__main__":
    key = jax.random.PRNGKey(0)
    kx, kp = jax.random.split(key)

    # NCDHW input, matching Conv3d(in_channels=5, kernel=(3,3,1)).
    # Folded lane width per batch element = H*W = 16*8 = 128 (exactly lane-dense).
    N, C, D, H, W = 2, 5, 16, 16, 8
    x = jax.random.normal(kx, (N, C, D, H, W), jnp.float32)
    params = init_params(kp)
    kparams = prepare_kernel_params(params)   # one-time weight prep (hoisted)

    out = jax.block_until_ready(autoencoder_forward_pallas(x, kparams))
    ref = jax.block_until_ready(autoencoder_forward_ref(x, params))

    assert out.shape == (N, C, D, H, W), out.shape
    np.testing.assert_allclose(np.asarray(out), np.asarray(ref),
                               rtol=1e-5, atol=1e-5)
    print("KERNEL_OK")
</pallas_src>

<mosaic_0001>
module attributes {stable_mosaic.version = 11 : i64} {
  func.func @_fused_autoencoder_kernel(%arg0: i32, %arg1: memref<1x5x16x128xf32, #tpu.memory_space<vmem>>, %arg2: memref<45xf32, #tpu.memory_space<smem>>, %arg3: memref<1xf32, #tpu.memory_space<smem>>, %arg4: memref<18xf32, #tpu.memory_space<smem>>, %arg5: memref<2xf32, #tpu.memory_space<smem>>, %arg6: memref<18xf32, #tpu.memory_space<smem>>, %arg7: memref<1xf32, #tpu.memory_space<smem>>, %arg8: memref<45xf32, #tpu.memory_space<smem>>, %arg9: memref<5xf32, #tpu.memory_space<smem>>, %arg10: memref<1x5x16x128xf32, #tpu.memory_space<vmem>>) attributes {dimension_semantics = [#tpu.dimension_semantics<parallel>], iteration_bounds = array<i64: 2>, scalar_prefetch = 0 : i64, scratch_operands = 0 : i64, tpu.core_type = #tpu.core_type<tc>, window_params = [{transform_indices = @transform_0, window_bounds = array<i64: 1, 5, 16, 128>}, {transform_indices = @transform_1, window_bounds = array<i64: 45>}, {transform_indices = @transform_2, window_bounds = array<i64: 1>}, {transform_indices = @transform_3, window_bounds = array<i64: 18>}, {transform_indices = @transform_4, window_bounds = array<i64: 2>}, {transform_indices = @transform_5, window_bounds = array<i64: 18>}, {transform_indices = @transform_6, window_bounds = array<i64: 1>}, {transform_indices = @transform_7, window_bounds = array<i64: 45>}, {transform_indices = @transform_8, window_bounds = array<i64: 5>}, {transform_indices = @transform_9, window_bounds = array<i64: 1, 5, 16, 128>}]} {
    %c0 = arith.constant 0 : index
    %c0_0 = arith.constant 0 : index
    %c0_1 = arith.constant 0 : index
    %c0_2 = arith.constant 0 : index
    %0 = vector.load %arg1[%c0, %c0_0, %c0_1, %c0_2] : memref<1x5x16x128xf32, #tpu.memory_space<vmem>>, vector<1x1x16x128xf32>
    %1 = vector.shape_cast %0 : vector<1x1x16x128xf32> to vector<16x128xf32>
    %c0_3 = arith.constant 0 : index
    %c1 = arith.constant 1 : index
    %c0_4 = arith.constant 0 : index
    %c0_5 = arith.constant 0 : index
    %2 = vector.load %arg1[%c0_3, %c1, %c0_4, %c0_5] : memref<1x5x16x128xf32, #tpu.memory_space<vmem>>, vector<1x1x16x128xf32>
    %3 = vector.shape_cast %2 : vector<1x1x16x128xf32> to vector<16x128xf32>
    %c0_6 = arith.constant 0 : index
    %c2 = arith.constant 2 : index
    %c0_7 = arith.constant 0 : index
    %c0_8 = arith.constant 0 : index
    %4 = vector.load %arg1[%c0_6, %c2, %c0_7, %c0_8] : memref<1x5x16x128xf32, #tpu.memory_space<vmem>>, vector<1x1x16x128xf32>
    %5 = vector.shape_cast %4 : vector<1x1x16x128xf32> to vector<16x128xf32>
    %c0_9 = arith.constant 0 : index
    %c3 = arith.constant 3 : index
    %c0_10 = arith.constant 0 : index
    %c0_11 = arith.constant 0 : index
    %6 = vector.load %arg1[%c0_9, %c3, %c0_10, %c0_11] : memref<1x5x16x128xf32, #tpu.memory_space<vmem>>, vector<1x1x16x128xf32>
    %7 = vector.shape_cast %6 : vector<1x1x16x128xf32> to vector<16x128xf32>
    %c0_12 = arith.constant 0 : index
    %c4 = arith.constant 4 : index
    %c0_13 = arith.constant 0 : index
    %c0_14 = arith.constant 0 : index
    %8 = vector.load %arg1[%c0_12, %c4, %c0_13, %c0_14] : memref<1x5x16x128xf32, #tpu.memory_space<vmem>>, vector<1x1x16x128xf32>
    %9 = vector.shape_cast %8 : vector<1x1x16x128xf32> to vector<16x128xf32>
    %c0_15 = arith.constant 0 : index
    %10 = memref.load %arg3[%c0_15] : memref<1xf32, #tpu.memory_space<smem>>
    %11 = vector.broadcast %10 : f32 to vector<16x128xf32>
    %c0_16 = arith.constant 0 : index
    %12 = memref.load %arg2[%c0_16] : memref<45xf32, #tpu.memory_space<smem>>
    %13 = vector.broadcast %12 : f32 to vector<16x128xf32>
    %14 = arith.mulf %13, %1 : vector<16x128xf32>
    %15 = arith.addf %11, %14 : vector<16x128xf32>
    %c120_i32 = arith.constant 120 : i32
    %16 = tpu.dynamic_rotate %1 by %c120_i32 dim 1 : vector<16x128xf32>, i32 -> vector<16x128xf32>
    %c1_17 = arith.constant 1 : index
    %17 = memref.load %arg2[%c1_17] : memref<45xf32, #tpu.memory_space<smem>>
    %18 = vector.broadcast %17 : f32 to vector<16x128xf32>
    %19 = arith.mulf %18, %16 : vector<16x128xf32>
    %20 = arith.addf %15, %19 : vector<16x128xf32>
    %c112_i32 = arith.constant 112 : i32
    %21 = tpu.dynamic_rotate %1 by %c112_i32 dim 1 : vector<16x128xf32>, i32 -> vector<16x128xf32>
    %c2_18 = arith.constant 2 : index
    %22 = memref.load %arg2[%c2_18] : memref<45xf32, #tpu.memory_space<smem>>
    %23 = vector.broadcast %22 : f32 to vector<16x128xf32>
    %24 = arith.mulf %23, %21 : vector<16x128xf32>
    %25 = arith.addf %20, %24 : vector<16x128xf32>
    %c15_i32 = arith.constant 15 : i32
    %26 = tpu.dynamic_rotate %1 by %c15_i32 dim 0 : vector<16x128xf32>, i32 -> vector<16x128xf32>
    %c3_19 = arith.constant 3 : index
    %27 = memref.load %arg2[%c3_19] : memref<45xf32, #tpu.memory_space<smem>>
    %28 = vector.broadcast %27 : f32 to vector<16x128xf32>
    %29 = arith.mulf %28, %26 : vector<16x128xf32>
    %30 = arith.addf %25, %29 : vector<16x128xf32>
    %c120_i32_20 = arith.constant 120 : i32
    %31 = tpu.dynamic_rotate %26 by %c120_i32_20 dim 1 : vector<16x128xf32>, i32 -> vector<16x128xf32>
    %c4_21 = arith.constant 4 : index
    %32 = memref.load %arg2[%c4_21] : memref<45xf32, #tpu.memory_space<smem>>
    %33 = vector.broadcast %32 : f32 to vector<16x128xf32>
    %34 = arith.mulf %33, %31 : vector<16x128xf32>
    %35 = arith.addf %30, %34 : vector<16x128xf32>
    %c112_i32_22 = arith.constant 112 : i32
    %36 = tpu.dynamic_rotate %26 by %c112_i32_22 dim 1 : vector<16x128xf32>, i32 -> vector<16x128xf32>
    %c5 = arith.constant 5 : index
    %37 = memref.load %arg2[%c5] : memref<45xf32, #tpu.memory_space<smem>>
    %38 = vector.broadcast %37 : f32 to vector<16x128xf32>
    %39 = arith.mulf %38, %36 : vector<16x128xf32>
    %40 = arith.addf %35, %39 : vector<16x128xf32>
    %c14_i32 = arith.constant 14 : i32
    %41 = tpu.dynamic_rotate %1 by %c14_i32 dim 0 : vector<16x128xf32>, i32 -> vector<16x128xf32>
    %c6 = arith.constant 6 : index
    %42 = memref.load %arg2[%c6] : memref<45xf32, #tpu.memory_space<smem>>
    %43 = vector.broadcast %42 : f32 to vector<16x128xf32>
    %44 = arith.mulf %43, %41 : vector<16x128xf32>
    %45 = arith.addf %40, %44 : vector<16x128xf32>
    %c120_i32_23 = arith.constant 120 : i32
    %46 = tpu.dynamic_rotate %41 by %c120_i32_23 dim 1 : vector<16x128xf32>, i32 -> vector<16x128xf32>
    %c7 = arith.constant 7 : index
    %47 = memref.load %arg2[%c7] : memref<45xf32, #tpu.memory_space<smem>>
    %48 = vector.broadcast %47 : f32 to vector<16x128xf32>
    %49 = arith.mulf %48, %46 : vector<16x128xf32>
    %50 = arith.addf %45, %49 : vector<16x128xf32>
    %c112_i32_24 = arith.constant 112 : i32
    %51 = tpu.dynamic_rotate %41 by %c112_i32_24 dim 1 : vector<16x128xf32>, i32 -> vector<16x128xf32>
    %c8 = arith.constant 8 : index
    %52 = memref.load %arg2[%c8] : memref<45xf32, #tpu.memory_space<smem>>
    %53 = vector.broadcast %52 : f32 to vector<16x128xf32>
    %54 = arith.mulf %53, %51 : vector<16x128xf32>
    %55 = arith.addf %50, %54 : vector<16x128xf32>
    %c9 = arith.constant 9 : index
    %56 = memref.load %arg2[%c9] : memref<45xf32, #tpu.memory_space<smem>>
    %57 = vector.broadcast %56 : f32 to vector<16x128xf32>
    %58 = arith.mulf %57, %3 : vector<16x128xf32>
    %59 = arith.addf %55, %58 : vector<16x128xf32>
    %c120_i32_25 = arith.constant 120 : i32
    %60 = tpu.dynamic_rotate %3 by %c120_i32_25 dim 1 : vector<16x128xf32>, i32 -> vector<16x128xf32>
    %c10 = arith.constant 10 : index
    %61 = memref.load %arg2[%c10] : memref<45xf32, #tpu.memory_space<smem>>
    %62 = vector.broadcast %61 : f32 to vector<16x128xf32>
    %63 = arith.mulf %62, %60 : vector<16x128xf32>
    %64 = arith.addf %59, %63 : vector<16x128xf32>
    %c112_i32_26 = arith.constant 112 : i32
    %65 = tpu.dynamic_rotate %3 by %c112_i32_26 dim 1 : vector<16x128xf32>, i32 -> vector<16x128xf32>
    %c11 = arith.constant 11 : index
    %66 = memref.load %arg2[%c11] : memref<45xf32, #tpu.memory_space<smem>>
    %67 = vector.broadcast %66 : f32 to vector<16x128xf32>
    %68 = arith.mulf %67, %65 : vector<16x128xf32>
    %69 = arith.addf %64, %68 : vector<16x128xf32>
    %c15_i32_27 = arith.constant 15 : i32
    %70 = tpu.dynamic_rotate %3 by %c15_i32_27 dim 0 : vector<16x128xf32>, i32 -> vector<16x128xf32>
    %c12 = arith.constant 12 : index
    %71 = memref.load %arg2[%c12] : memref<45xf32, #tpu.memory_space<smem>>
    %72 = vector.broadcast %71 : f32 to vector<16x128xf32>
    %73 = arith.mulf %72, %70 : vector<16x128xf32>
    %74 = arith.addf %69, %73 : vector<16x128xf32>
    %c120_i32_28 = arith.constant 120 : i32
    %75 = tpu.dynamic_rotate %70 by %c120_i32_28 dim 1 : vector<16x128xf32>, i32 -> vector<16x128xf32>
    %c13 = arith.constant 13 : index
    %76 = memref.load %arg2[%c13] : memref<45xf32, #tpu.memory_space<smem>>
    %77 = vector.broadcast %76 : f32 to vector<16x128xf32>
    %78 = arith.mulf %77, %75 : vector<16x128xf32>
    %79 = arith.addf %74, %78 : vector<16x128xf32>
    %c112_i32_29 = arith.constant 112 : i32
    %80 = tpu.dynamic_rotate %70 by %c112_i32_29 dim 1 : vector<16x128xf32>, i32 -> vector<16x128xf32>
    %c14 = arith.constant 14 : index
    %81 = memref.load %arg2[%c14] : memref<45xf32, #tpu.memory_space<smem>>
    %82 = vector.broadcast %81 : f32 to vector<16x128xf32>
    %83 = arith.mulf %82, %80 : vector<16x128xf32>
    %84 = arith.addf %79, %83 : vector<16x128xf32>
    %c14_i32_30 = arith.constant 14 : i32
    %85 = tpu.dynamic_rotate %3 by %c14_i32_30 dim 0 : vector<16x128xf32>, i32 -> vector<16x128xf32>
    %c15 = arith.constant 15 : index
    %86 = memref.load %arg2[%c15] : memref<45xf32, #tpu.memory_space<smem>>
    %87 = vector.broadcast %86 : f32 to vector<16x128xf32>
    %88 = arith.mulf %87, %85 : vector<16x128xf32>
    %89 = arith.addf %84, %88 : vector<16x128xf32>
    %c120_i32_31 = arith.constant 120 : i32
    %90 = tpu.dynamic_rotate %85 by %c120_i32_31 dim 1 : vector<16x128xf32>, i32 -> vector<16x128xf32>
    %c16 = arith.constant 16 : index
    %91 = memref.load %arg2[%c16] : memref<45xf32, #tpu.memory_space<smem>>
    %92 = vector.broadcast %91 : f32 to vector<16x128xf32>
    %93 = arith.mulf %92, %90 : vector<16x128xf32>
    %94 = arith.addf %89, %93 : vector<16x128xf32>
    %c112_i32_32 = arith.constant 112 : i32
    %95 = tpu.dynamic_rotate %85 by %c112_i32_32 dim 1 : vector<16x128xf32>, i32 -> vector<16x128xf32>
    %c17 = arith.constant 17 : index
    %96 = memref.load %arg2[%c17] : memref<45xf32, #tpu.memory_space<smem>>
    %97 = vector.broadcast %96 : f32 to vector<16x128xf32>
    %98 = arith.mulf %97, %95 : vector<16x128xf32>
    %99 = arith.addf %94, %98 : vector<16x128xf32>
    %c18 = arith.constant 18 : index
    %100 = memref.load %arg2[%c18] : memref<45xf32, #tpu.memory_space<smem>>
    %101 = vector.broadcast %100 : f32 to vector<16x128xf32>
    %102 = arith.mulf %101, %5 : vector<16x128xf32>
    %103 = arith.addf %99, %102 : vector<16x128xf32>
    %c120_i32_33 = arith.constant 120 : i32
    %104 = tpu.dynamic_rotate %5 by %c120_i32_33 dim 1 : vector<16x128xf32>, i32 -> vector<16x128xf32>
    %c19 = arith.constant 19 : index
    %105 = memref.load %arg2[%c19] : memref<45xf32, #tpu.memory_space<smem>>
    %106 = vector.broadcast %105 : f32 to vector<16x128xf32>
    %107 = arith.mulf %106, %104 : vector<16x128xf32>
    %108 = arith.addf %103, %107 : vector<16x128xf32>
    %c112_i32_34 = arith.constant 112 : i32
    %109 = tpu.dynamic_rotate %5 by %c112_i32_34 dim 1 : vector<16x128xf32>, i32 -> vector<16x128xf32>
    %c20 = arith.constant 20 : index
    %110 = memref.load %arg2[%c20] : memref<45xf32, #tpu.memory_space<smem>>
    %111 = vector.broadcast %110 : f32 to vector<16x128xf32>
    %112 = arith.mulf %111, %109 : vector<16x128xf32>
    %113 = arith.addf %108, %112 : vector<16x128xf32>
    %c15_i32_35 = arith.constant 15 : i32
    %114 = tpu.dynamic_rotate %5 by %c15_i32_35 dim 0 : vector<16x128xf32>, i32 -> vector<16x128xf32>
    %c21 = arith.constant 21 : index
    %115 = memref.load %arg2[%c21] : memref<45xf32, #tpu.memory_space<smem>>
    %116 = vector.broadcast %115 : f32 to vector<16x128xf32>
    %117 = arith.mulf %116, %114 : vector<16x128xf32>
    %118 = arith.addf %113, %117 : vector<16x128xf32>
    %c120_i32_36 = arith.constant 120 : i32
    %119 = tpu.dynamic_rotate %114 by %c120_i32_36 dim 1 : vector<16x128xf32>, i32 -> vector<16x128xf32>
    %c22 = arith.constant 22 : index
    %120 = memref.load %arg2[%c22] : memref<45xf32, #tpu.memory_space<smem>>
    %121 = vector.broadcast %120 : f32 to vector<16x128xf32>
    %122 = arith.mulf %121, %119 : vector<16x128xf32>
    %123 = arith.addf %118, %122 : vector<16x128xf32>
    %c112_i32_37 = arith.constant 112 : i32
    %124 = tpu.dynamic_rotate %114 by %c112_i32_37 dim 1 : vector<16x128xf32>, i32 -> vector<16x128xf32>
    %c23 = arith.constant 23 : index
    %125 = memref.load %arg2[%c23] : memref<45xf32, #tpu.memory_space<smem>>
    %126 = vector.broadcast %125 : f32 to vector<16x128xf32>
    %127 = arith.mulf %126, %124 : vector<16x128xf32>
    %128 = arith.addf %123, %127 : vector<16x128xf32>
    %c14_i32_38 = arith.constant 14 : i32
    %129 = tpu.dynamic_rotate %5 by %c14_i32_38 dim 0 : vector<16x128xf32>, i32 -> vector<16x128xf32>
    %c24 = arith.constant 24 : index
    %130 = memref.load %arg2[%c24] : memref<45xf32, #tpu.memory_space<smem>>
    %131 = vector.broadcast %130 : f32 to vector<16x128xf32>
    %132 = arith.mulf %131, %129 : vector<16x128xf32>
    %133 = arith.addf %128, %132 : vector<16x128xf32>
    %c120_i32_39 = arith.constant 120 : i32
    %134 = tpu.dynamic_rotate %129 by %c120_i32_39 dim 1 : vector<16x128xf32>, i32 -> vector<16x128xf32>
    %c25 = arith.constant 25 : index
    %135 = memref.load %arg2[%c25] : memref<45xf32, #tpu.memory_space<smem>>
    %136 = vector.broadcast %135 : f32 to vector<16x128xf32>
    %137 = arith.mulf %136, %134 : vector<16x128xf32>
    %138 = arith.addf %133, %137 : vector<16x128xf32>
    %c112_i32_40 = arith.constant 112 : i32
    %139 = tpu.dynamic_rotate %129 by %c112_i32_40 dim 1 : vector<16x128xf32>, i32 -> vector<16x128xf32>
    %c26 = arith.constant 26 : index
    %140 = memref.load %arg2[%c26] : memref<45xf32, #tpu.memory_space<smem>>
    %141 = vector.broadcast %140 : f32 to vector<16x128xf32>
    %142 = arith.mulf %141, %139 : vector<16x128xf32>
    %143 = arith.addf %138, %142 : vector<16x128xf32>
    %c27 = arith.constant 27 : index
    %144 = memref.load %arg2[%c27] : memref<45xf32, #tpu.memory_space<smem>>
    %145 = vector.broadcast %144 : f32 to vector<16x128xf32>
    %146 = arith.mulf %145, %7 : vector<16x128xf32>
    %147 = arith.addf %143, %146 : vector<16x128xf32>
    %c120_i32_41 = arith.constant 120 : i32
    %148 = tpu.dynamic_rotate %7 by %c120_i32_41 dim 1 : vector<16x128xf32>, i32 -> vector<16x128xf32>
    %c28 = arith.constant 28 : index
    %149 = memref.load %arg2[%c28] : memref<45xf32, #tpu.memory_space<smem>>
    %150 = vector.broadcast %149 : f32 to vector<16x128xf32>
    %151 = arith.mulf %150, %148 : vector<16x128xf32>
    %152 = arith.addf %147, %151 : vector<16x128xf32>
    %c112_i32_42 = arith.constant 112 : i32
    %153 = tpu.dynamic_rotate %7 by %c112_i32_42 dim 1 : vector<16x128xf32>, i32 -> vector<16x128xf32>
    %c29 = arith.constant 29 : index
    %154 = memref.load %arg2[%c29] : memref<45xf32, #tpu.memory_space<smem>>
    %155 = vector.broadcast %154 : f32 to vector<16x128xf32>
    %156 = arith.mulf %155, %153 : vector<16x128xf32>
    %157 = arith.addf %152, %156 : vector<16x128xf32>
    %c15_i32_43 = arith.constant 15 : i32
    %158 = tpu.dynamic_rotate %7 by %c15_i32_43 dim 0 : vector<16x128xf32>, i32 -> vector<16x128xf32>
    %c30 = arith.constant 30 : index
    %159 = memref.load %arg2[%c30] : memref<45xf32, #tpu.memory_space<smem>>
    %160 = vector.broadcast %159 : f32 to vector<16x128xf32>
    %161 = arith.mulf %160, %158 : vector<16x128xf32>
    %162 = arith.addf %157, %161 : vector<16x128xf32>
    %c120_i32_44 = arith.constant 120 : i32
    %163 = tpu.dynamic_rotate %158 by %c120_i32_44 dim 1 : vector<16x128xf32>, i32 -> vector<16x128xf32>
    %c31 = arith.constant 31 : index
    %164 = memref.load %arg2[%c31] : memref<45xf32, #tpu.memory_space<smem>>
    %165 = vector.broadcast %164 : f32 to vector<16x128xf32>
    %166 = arith.mulf %165, %163 : vector<16x128xf32>
    %167 = arith.addf %162, %166 : vector<16x128xf32>
    %c112_i32_45 = arith.constant 112 : i32
    %168 = tpu.dynamic_rotate %158 by %c112_i32_45 dim 1 : vector<16x128xf32>, i32 -> vector<16x128xf32>
    %c32 = arith.constant 32 : index
    %169 = memref.load %arg2[%c32] : memref<45xf32, #tpu.memory_space<smem>>
    %170 = vector.broadcast %169 : f32 to vector<16x128xf32>
    %171 = arith.mulf %170, %168 : vector<16x128xf32>
    %172 = arith.addf %167, %171 : vector<16x128xf32>
    %c14_i32_46 = arith.constant 14 : i32
    %173 = tpu.dynamic_rotate %7 by %c14_i32_46 dim 0 : vector<16x128xf32>, i32 -> vector<16x128xf32>
    %c33 = arith.constant 33 : index
    %174 = memref.load %arg2[%c33] : memref<45xf32, #tpu.memory_space<smem>>
    %175 = vector.broadcast %174 : f32 to vector<16x128xf32>
    %176 = arith.mulf %175, %173 : vector<16x128xf32>
    %177 = arith.addf %172, %176 : vector<16x128xf32>
    %c120_i32_47 = arith.constant 120 : i32
    %178 = tpu.dynamic_rotate %173 by %c120_i32_47 dim 1 : vector<16x128xf32>, i32 -> vector<16x128xf32>
    %c34 = arith.constant 34 : index
    %179 = memref.load %arg2[%c34] : memref<45xf32, #tpu.memory_space<smem>>
    %180 = vector.broadcast %179 : f32 to vector<16x128xf32>
    %181 = arith.mulf %180, %178 : vector<16x128xf32>
    %182 = arith.addf %177, %181 : vector<16x128xf32>
    %c112_i32_48 = arith.constant 112 : i32
    %183 = tpu.dynamic_rotate %173 by %c112_i32_48 dim 1 : vector<16x128xf32>, i32 -> vector<16x128xf32>
    %c35 = arith.constant 35 : index
    %184 = memref.load %arg2[%c35] : memref<45xf32, #tpu.memory_space<smem>>
    %185 = vector.broadcast %184 : f32 to vector<16x128xf32>
    %186 = arith.mulf %185, %183 : vector<16x128xf32>
    %187 = arith.addf %182, %186 : vector<16x128xf32>
    %c36 = arith.constant 36 : index
    %188 = memref.load %arg2[%c36] : memref<45xf32, #tpu.memory_space<smem>>
    %189 = vector.broadcast %188 : f32 to vector<16x128xf32>
    %190 = arith.mulf %189, %9 : vector<16x128xf32>
    %191 = arith.addf %187, %190 : vector<16x128xf32>
    %c120_i32_49 = arith.constant 120 : i32
    %192 = tpu.dynamic_rotate %9 by %c120_i32_49 dim 1 : vector<16x128xf32>, i32 -> vector<16x128xf32>
    %c37 = arith.constant 37 : index
    %193 = memref.load %arg2[%c37] : memref<45xf32, #tpu.memory_space<smem>>
    %194 = vector.broadcast %193 : f32 to vector<16x128xf32>
    %195 = arith.mulf %194, %192 : vector<16x128xf32>
    %196 = arith.addf %191, %195 : vector<16x128xf32>
    %c112_i32_50 = arith.constant 112 : i32
    %197 = tpu.dynamic_rotate %9 by %c112_i32_50 dim 1 : vector<16x128xf32>, i32 -> vector<16x128xf32>
    %c38 = arith.constant 38 : index
    %198 = memref.load %arg2[%c38] : memref<45xf32, #tpu.memory_space<smem>>
    %199 = vector.broadcast %198 : f32 to vector<16x128xf32>
    %200 = arith.mulf %199, %197 : vector<16x128xf32>
    %201 = arith.addf %196, %200 : vector<16x128xf32>
    %c15_i32_51 = arith.constant 15 : i32
    %202 = tpu.dynamic_rotate %9 by %c15_i32_51 dim 0 : vector<16x128xf32>, i32 -> vector<16x128xf32>
    %c39 = arith.constant 39 : index
    %203 = memref.load %arg2[%c39] : memref<45xf32, #tpu.memory_space<smem>>
    %204 = vector.broadcast %203 : f32 to vector<16x128xf32>
    %205 = arith.mulf %204, %202 : vector<16x128xf32>
    %206 = arith.addf %201, %205 : vector<16x128xf32>
    %c120_i32_52 = arith.constant 120 : i32
    %207 = tpu.dynamic_rotate %202 by %c120_i32_52 dim 1 : vector<16x128xf32>, i32 -> vector<16x128xf32>
    %c40 = arith.constant 40 : index
    %208 = memref.load %arg2[%c40] : memref<45xf32, #tpu.memory_space<smem>>
    %209 = vector.broadcast %208 : f32 to vector<16x128xf32>
    %210 = arith.mulf %209, %207 : vector<16x128xf32>
    %211 = arith.addf %206, %210 : vector<16x128xf32>
    %c112_i32_53 = arith.constant 112 : i32
    %212 = tpu.dynamic_rotate %202 by %c112_i32_53 dim 1 : vector<16x128xf32>, i32 -> vector<16x128xf32>
    %c41 = arith.constant 41 : index
    %213 = memref.load %arg2[%c41] : memref<45xf32, #tpu.memory_space<smem>>
    %214 = vector.broadcast %213 : f32 to vector<16x128xf32>
    %215 = arith.mulf %214, %212 : vector<16x128xf32>
    %216 = arith.addf %211, %215 : vector<16x128xf32>
    %c14_i32_54 = arith.constant 14 : i32
    %217 = tpu.dynamic_rotate %9 by %c14_i32_54 dim 0 : vector<16x128xf32>, i32 -> vector<16x128xf32>
    %c42 = arith.constant 42 : index
    %218 = memref.load %arg2[%c42] : memref<45xf32, #tpu.memory_space<smem>>
    %219 = vector.broadcast %218 : f32 to vector<16x128xf32>
    %220 = arith.mulf %219, %217 : vector<16x128xf32>
    %221 = arith.addf %216, %220 : vector<16x128xf32>
    %c120_i32_55 = arith.constant 120 : i32
    %222 = tpu.dynamic_rotate %217 by %c120_i32_55 dim 1 : vector<16x128xf32>, i32 -> vector<16x128xf32>
    %c43 = arith.constant 43 : index
    %223 = memref.load %arg2[%c43] : memref<45xf32, #tpu.memory_space<smem>>
    %224 = vector.broadcast %223 : f32 to vector<16x128xf32>
    %225 = arith.mulf %224, %222 : vector<16x128xf32>
    %226 = arith.addf %221, %225 : vector<16x128xf32>
    %c112_i32_56 = arith.constant 112 : i32
    %227 = tpu.dynamic_rotate %217 by %c112_i32_56 dim 1 : vector<16x128xf32>, i32 -> vector<16x128xf32>
    %c44 = arith.constant 44 : index
    %228 = memref.load %arg2[%c44] : memref<45xf32, #tpu.memory_space<smem>>
    %229 = vector.broadcast %228 : f32 to vector<16x128xf32>
    %230 = arith.mulf %229, %227 : vector<16x128xf32>
    %231 = arith.addf %226, %230 : vector<16x128xf32>
    %232 = math.tanh %231 : vector<16x128xf32>
    %cst = arith.constant 5.000000e-01 : f32
    %233 = vector.broadcast %cst : f32 to vector<16x128xf32>
    %234 = arith.mulf %233, %232 : vector<16x128xf32>
    %cst_57 = arith.constant 5.000000e-01 : f32
    %235 = vector.broadcast %cst_57 : f32 to vector<16x128xf32>
    %236 = arith.addf %234, %235 : vector<16x128xf32>
    %c0_58 = arith.constant 0 : index
    %237 = memref.load %arg5[%c0_58] : memref<2xf32, #tpu.memory_space<smem>>
    %238 = vector.broadcast %237 : f32 to vector<16x128xf32>
    %c1_59 = arith.constant 1 : index
    %239 = memref.load %arg5[%c1_59] : memref<2xf32, #tpu.memory_space<smem>>
    %240 = vector.broadcast %239 : f32 to vector<16x128xf32>
    %c0_60 = arith.constant 0 : index
    %241 = memref.load %arg4[%c0_60] : memref<18xf32, #tpu.memory_space<smem>>
    %242 = vector.broadcast %241 : f32 to vector<16x128xf32>
    %243 = arith.mulf %242, %236 : vector<16x128xf32>
    %244 = arith.addf %238, %243 : vector<16x128xf32>
    %c9_61 = arith.constant 9 : index
    %245 = memref.load %arg4[%c9_61] : memref<18xf32, #tpu.memory_space<smem>>
    %246 = vector.broadcast %245 : f32 to vector<16x128xf32>
    %247 = arith.mulf %246, %236 : vector<16x128xf32>
    %248 = arith.addf %240, %247 : vector<16x128xf32>
    %c120_i32_62 = arith.constant 120 : i32
    %249 = tpu.dynamic_rotate %236 by %c120_i32_62 dim 1 : vector<16x128xf32>, i32 -> vector<16x128xf32>
    %c1_63 = arith.constant 1 : index
    %250 = memref.load %arg4[%c1_63] : memref<18xf32, #tpu.memory_space<smem>>
    %251 = vector.broadcast %250 : f32 to vector<16x128xf32>
    %252 = arith.mulf %251, %249 : vector<16x128xf32>
    %253 = arith.addf %244, %252 : vector<16x128xf32>
    %c10_64 = arith.constant 10 : index
    %254 = memref.load %arg4[%c10_64] : memref<18xf32, #tpu.memory_space<smem>>
    %255 = vector.broadcast %254 : f32 to vector<16x128xf32>
    %256 = arith.mulf %255, %249 : vector<16x128xf32>
    %257 = arith.addf %248, %256 : vector<16x128xf32>
    %c112_i32_65 = arith.constant 112 : i32
    %258 = tpu.dynamic_rotate %236 by %c112_i32_65 dim 1 : vector<16x128xf32>, i32 -> vector<16x128xf32>
    %c2_66 = arith.constant 2 : index
    %259 = memref.load %arg4[%c2_66] : memref<18xf32, #tpu.memory_space<smem>>
    %260 = vector.broadcast %259 : f32 to vector<16x128xf32>
    %261 = arith.mulf %260, %258 : vector<16x128xf32>
    %262 = arith.addf %253, %261 : vector<16x128xf32>
    %c11_67 = arith.constant 11 : index
    %263 = memref.load %arg4[%c11_67] : memref<18xf32, #tpu.memory_space<smem>>
    %264 = vector.broadcast %263 : f32 to vector<16x128xf32>
    %265 = arith.mulf %264, %258 : vector<16x128xf32>
    %266 = arith.addf %257, %265 : vector<16x128xf32>
    %c15_i32_68 = arith.constant 15 : i32
    %267 = tpu.dynamic_rotate %236 by %c15_i32_68 dim 0 : vector<16x128xf32>, i32 -> vector<16x128xf32>
    %c3_69 = arith.constant 3 : index
    %268 = memref.load %arg4[%c3_69] : memref<18xf32, #tpu.memory_space<smem>>
    %269 = vector.broadcast %268 : f32 to vector<16x128xf32>
    %270 = arith.mulf %269, %267 : vector<16x128xf32>
    %271 = arith.addf %262, %270 : vector<16x128xf32>
    %c12_70 = arith.constant 12 : index
    %272 = memref.load %arg4[%c12_70] : memref<18xf32, #tpu.memory_space<smem>>
    %273 = vector.broadcast %272 : f32 to vector<16x128xf32>
    %274 = arith.mulf %273, %267 : vector<16x128xf32>
    %275 = arith.addf %266, %274 : vector<16x128xf32>
    %c120_i32_71 = arith.constant 120 : i32
    %276 = tpu.dynamic_rotate %267 by %c120_i32_71 dim 1 : vector<16x128xf32>, i32 -> vector<16x128xf32>
    %c4_72 = arith.constant 4 : index
    %277 = memref.load %arg4[%c4_72] : memref<18xf32, #tpu.memory_space<smem>>
    %278 = vector.broadcast %277 : f32 to vector<16x128xf32>
    %279 = arith.mulf %278, %276 : vector<16x128xf32>
    %280 = arith.addf %271, %279 : vector<16x128xf32>
    %c13_73 = arith.constant 13 : index
    %281 = memref.load %arg4[%c13_73] : memref<18xf32, #tpu.memory_space<smem>>
    %282 = vector.broadcast %281 : f32 to vector<16x128xf32>
    %283 = arith.mulf %282, %276 : vector<16x128xf32>
    %284 = arith.addf %275, %283 : vector<16x128xf32>
    %c112_i32_74 = arith.constant 112 : i32
    %285 = tpu.dynamic_rotate %267 by %c112_i32_74 dim 1 : vector<16x128xf32>, i32 -> vector<16x128xf32>
    %c5_75 = arith.constant 5 : index
    %286 = memref.load %arg4[%c5_75] : memref<18xf32, #tpu.memory_space<smem>>
    %287 = vector.broadcast %286 : f32 to vector<16x128xf32>
    %288 = arith.mulf %287, %285 : vector<16x128xf32>
    %289 = arith.addf %280, %288 : vector<16x128xf32>
    %c14_76 = arith.constant 14 : index
    %290 = memref.load %arg4[%c14_76] : memref<18xf32, #tpu.memory_space<smem>>
    %291 = vector.broadcast %290 : f32 to vector<16x128xf32>
    %292 = arith.mulf %291, %285 : vector<16x128xf32>
    %293 = arith.addf %284, %292 : vector<16x128xf32>
    %c14_i32_77 = arith.constant 14 : i32
    %294 = tpu.dynamic_rotate %236 by %c14_i32_77 dim 0 : vector<16x128xf32>, i32 -> vector<16x128xf32>
    %c6_78 = arith.constant 6 : index
    %295 = memref.load %arg4[%c6_78] : memref<18xf32, #tpu.memory_space<smem>>
    %296 = vector.broadcast %295 : f32 to vector<16x128xf32>
    %297 = arith.mulf %296, %294 : vector<16x128xf32>
    %298 = arith.addf %289, %297 : vector<16x128xf32>
    %c15_79 = arith.constant 15 : index
    %299 = memref.load %arg4[%c15_79] : memref<18xf32, #tpu.memory_space<smem>>
    %300 = vector.broadcast %299 : f32 to vector<16x128xf32>
    %301 = arith.mulf %300, %294 : vector<16x128xf32>
    %302 = arith.addf %293, %301 : vector<16x128xf32>
    %c120_i32_80 = arith.constant 120 : i32
    %303 = tpu.dynamic_rotate %294 by %c120_i32_80 dim 1 : vector<16x128xf32>, i32 -> vector<16x128xf32>
    %c7_81 = arith.constant 7 : index
    %304 = memref.load %arg4[%c7_81] : memref<18xf32, #tpu.memory_space<smem>>
    %305 = vector.broadcast %304 : f32 to vector<16x128xf32>
    %306 = arith.mulf %305, %303 : vector<16x128xf32>
    %307 = arith.addf %298, %306 : vector<16x128xf32>
    %c16_82 = arith.constant 16 : index
    %308 = memref.load %arg4[%c16_82] : memref<18xf32, #tpu.memory_space<smem>>
    %309 = vector.broadcast %308 : f32 to vector<16x128xf32>
    %310 = arith.mulf %309, %303 : vector<16x128xf32>
    %311 = arith.addf %302, %310 : vector<16x128xf32>
    %c112_i32_83 = arith.constant 112 : i32
    %312 = tpu.dynamic_rotate %294 by %c112_i32_83 dim 1 : vector<16x128xf32>, i32 -> vector<16x128xf32>
    %c8_84 = arith.constant 8 : index
    %313 = memref.load %arg4[%c8_84] : memref<18xf32, #tpu.memory_space<smem>>
    %314 = vector.broadcast %313 : f32 to vector<16x128xf32>
    %315 = arith.mulf %314, %312 : vector<16x128xf32>
    %316 = arith.addf %307, %315 : vector<16x128xf32>
    %c17_85 = arith.constant 17 : index
    %317 = memref.load %arg4[%c17_85] : memref<18xf32, #tpu.memory_space<smem>>
    %318 = vector.broadcast %317 : f32 to vector<16x128xf32>
    %319 = arith.mulf %318, %312 : vector<16x128xf32>
    %320 = arith.addf %311, %319 : vector<16x128xf32>
    %321 = math.tanh %316 : vector<16x128xf32>
    %cst_86 = arith.constant 5.000000e-01 : f32
    %322 = vector.broadcast %cst_86 : f32 to vector<16x128xf32>
    %323 = arith.mulf %322, %321 : vector<16x128xf32>
    %cst_87 = arith.constant 5.000000e-01 : f32
    %324 = vector.broadcast %cst_87 : f32 to vector<16x128xf32>
    %325 = arith.addf %323, %324 : vector<16x128xf32>
    %326 = math.tanh %320 : vector<16x128xf32>
    %cst_88 = arith.constant 5.000000e-01 : f32
    %327 = vector.broadcast %cst_88 : f32 to vector<16x128xf32>
    %328 = arith.mulf %327, %326 : vector<16x128xf32>
    %cst_89 = arith.constant 5.000000e-01 : f32
    %329 = vector.broadcast %cst_89 : f32 to vector<16x128xf32>
    %330 = arith.addf %328, %329 : vector<16x128xf32>
    %331 = tpu.iota {dimensions = array<i32: 0>} : vector<16x128xi32>
    %332 = tpu.iota {dimensions = array<i32: 1>} : vector<16x128xi32>
    %c12_i32 = arith.constant 12 : i32
    %333 = vector.broadcast %c12_i32 : i32 to vector<16x128xi32>
    %334 = arith.cmpi slt, %331, %333 : vector<16x128xi32>
    %c96_i32 = arith.constant 96 : i32
    %335 = vector.broadcast %c96_i32 : i32 to vector<16x128xi32>
    %336 = arith.cmpi slt, %332, %335 : vector<16x128xi32>
    %337 = arith.andi %334, %336 : vector<16x128xi1>
    %cst_90 = arith.constant 0.000000e+00 : f32
    %338 = vector.broadcast %cst_90 : f32 to vector<16x128xf32>
    %339 = arith.select %337, %325, %338 : vector<16x128xi1>, vector<16x128xf32>
    %cst_91 = arith.constant 0.000000e+00 : f32
    %340 = vector.broadcast %cst_91 : f32 to vector<16x128xf32>
    %341 = arith.select %337, %330, %340 : vector<16x128xi1>, vector<16x128xf32>
    %c0_92 = arith.constant 0 : index
    %342 = memref.load %arg7[%c0_92] : memref<1xf32, #tpu.memory_space<smem>>
    %343 = vector.broadcast %342 : f32 to vector<16x128xf32>
    %c2_i32 = arith.constant 2 : i32
    %344 = tpu.dynamic_rotate %339 by %c2_i32 dim 0 : vector<16x128xf32>, i32 -> vector<16x128xf32>
    %c16_i32 = arith.constant 16 : i32
    %345 = tpu.dynamic_rotate %344 by %c16_i32 dim 1 : vector<16x128xf32>, i32 -> vector<16x128xf32>
    %c0_93 = arith.constant 0 : index
    %346 = memref.load %arg6[%c0_93] : memref<18xf32, #tpu.memory_space<smem>>
    %347 = vector.broadcast %346 : f32 to vector<16x128xf32>
    %348 = arith.mulf %347, %345 : vector<16x128xf32>
    %349 = arith.addf %343, %348 : vector<16x128xf32>
    %c8_i32 = arith.constant 8 : i32
    %350 = tpu.dynamic_rotate %344 by %c8_i32 dim 1 : vector<16x128xf32>, i32 -> vector<16x128xf32>
    %c1_94 = arith.constant 1 : index
    %351 = memref.load %arg6[%c1_94] : memref<18xf32, #tpu.memory_space<smem>>
    %352 = vector.broadcast %351 : f32 to vector<16x128xf32>
    %353 = arith.mulf %352, %350 : vector<16x128xf32>
    %354 = arith.addf %349, %353 : vector<16x128xf32>
    %c2_95 = arith.constant 2 : index
    %355 = memref.load %arg6[%c2_95] : memref<18xf32, #tpu.memory_space<smem>>
    %356 = vector.broadcast %355 : f32 to vector<16x128xf32>
    %357 = arith.mulf %356, %344 : vector<16x128xf32>
    %358 = arith.addf %354, %357 : vector<16x128xf32>
    %c1_i32 = arith.constant 1 : i32
    %359 = tpu.dynamic_rotate %339 by %c1_i32 dim 0 : vector<16x128xf32>, i32 -> vector<16x128xf32>
    %c16_i32_96 = arith.constant 16 : i32
    %360 = tpu.dynamic_rotate %359 by %c16_i32_96 dim 1 : vector<16x128xf32>, i32 -> vector<16x128xf32>
    %c3_97 = arith.constant 3 : index
    %361 = memref.load %arg6[%c3_97] : memref<18xf32, #tpu.memory_space<smem>>
    %362 = vector.broadcast %361 : f32 to vector<16x128xf32>
    %363 = arith.mulf %362, %360 : vector<16x128xf32>
    %364 = arith.addf %358, %363 : vector<16x128xf32>
    %c8_i32_98 = arith.constant 8 : i32
    %365 = tpu.dynamic_rotate %359 by %c8_i32_98 dim 1 : vector<16x128xf32>, i32 -> vector<16x128xf32>
    %c4_99 = arith.constant 4 : index
    %366 = memref.load %arg6[%c4_99] : memref<18xf32, #tpu.memory_space<smem>>
    %367 = vector.broadcast %366 : f32 to vector<16x128xf32>
    %368 = arith.mulf %367, %365 : vector<16x128xf32>
    %369 = arith.addf %364, %368 : vector<16x128xf32>
    %c5_100 = arith.constant 5 : index
    %370 = memref.load %arg6[%c5_100] : memref<18xf32, #tpu.memory_space<smem>>
    %371 = vector.broadcast %370 : f32 to vector<16x128xf32>
    %372 = arith.mulf %371, %359 : vector<16x128xf32>
    %373 = arith.addf %369, %372 : vector<16x128xf32>
    %c16_i32_101 = arith.constant 16 : i32
    %374 = tpu.dynamic_rotate %339 by %c16_i32_101 dim 1 : vector<16x128xf32>, i32 -> vector<16x128xf32>
    %c6_102 = arith.constant 6 : index
    %375 = memref.load %arg6[%c6_102] : memref<18xf32, #tpu.memory_space<smem>>
    %376 = vector.broadcast %375 : f32 to vector<16x128xf32>
    %377 = arith.mulf %376, %374 : vector<16x128xf32>
    %378 = arith.addf %373, %377 : vector<16x128xf32>
    %c8_i32_103 = arith.constant 8 : i32
    %379 = tpu.dynamic_rotate %339 by %c8_i32_103 dim 1 : vector<16x128xf32>, i32 -> vector<16x128xf32>
    %c7_104 = arith.constant 7 : index
    %380 = memref.load %arg6[%c7_104] : memref<18xf32, #tpu.memory_space<smem>>
    %381 = vector.broadcast %380 : f32 to vector<16x128xf32>
    %382 = arith.mulf %381, %379 : vector<16x128xf32>
    %383 = arith.addf %378, %382 : vector<16x128xf32>
    %c8_105 = arith.constant 8 : index
    %384 = memref.load %arg6[%c8_105] : memref<18xf32, #tpu.memory_space<smem>>
    %385 = vector.broadcast %384 : f32 to vector<16x128xf32>
    %386 = arith.mulf %385, %339 : vector<16x128xf32>
    %387 = arith.addf %383, %386 : vector<16x128xf32>
    %c2_i32_106 = arith.constant 2 : i32
    %388 = tpu.dynamic_rotate %341 by %c2_i32_106 dim 0 : vector<16x128xf32>, i32 -> vector<16x128xf32>
    %c16_i32_107 = arith.constant 16 : i32
    %389 = tpu.dynamic_rotate %388 by %c16_i32_107 dim 1 : vector<16x128xf32>, i32 -> vector<16x128xf32>
    %c9_108 = arith.constant 9 : index
    %390 = memref.load %arg6[%c9_108] : memref<18xf32, #tpu.memory_space<smem>>
    %391 = vector.broadcast %390 : f32 to vector<16x128xf32>
    %392 = arith.mulf %391, %389 : vector<16x128xf32>
    %393 = arith.addf %387, %392 : vector<16x128xf32>
    %c8_i32_109 = arith.constant 8 : i32
    %394 = tpu.dynamic_rotate %388 by %c8_i32_109 dim 1 : vector<16x128xf32>, i32 -> vector<16x128xf32>
    %c10_110 = arith.constant 10 : index
    %395 = memref.load %arg6[%c10_110] : memref<18xf32, #tpu.memory_space<smem>>
    %396 = vector.broadcast %395 : f32 to vector<16x128xf32>
    %397 = arith.mulf %396, %394 : vector<16x128xf32>
    %398 = arith.addf %393, %397 : vector<16x128xf32>
    %c11_111 = arith.constant 11 : index
    %399 = memref.load %arg6[%c11_111] : memref<18xf32, #tpu.memory_space<smem>>
    %400 = vector.broadcast %399 : f32 to vector<16x128xf32>
    %401 = arith.mulf %400, %388 : vector<16x128xf32>
    %402 = arith.addf %398, %401 : vector<16x128xf32>
    %c1_i32_112 = arith.constant 1 : i32
    %403 = tpu.dynamic_rotate %341 by %c1_i32_112 dim 0 : vector<16x128xf32>, i32 -> vector<16x128xf32>
    %c16_i32_113 = arith.constant 16 : i32
    %404 = tpu.dynamic_rotate %403 by %c16_i32_113 dim 1 : vector<16x128xf32>, i32 -> vector<16x128xf32>
    %c12_114 = arith.constant 12 : index
    %405 = memref.load %arg6[%c12_114] : memref<18xf32, #tpu.memory_space<smem>>
    %406 = vector.broadcast %405 : f32 to vector<16x128xf32>
    %407 = arith.mulf %406, %404 : vector<16x128xf32>
    %408 = arith.addf %402, %407 : vector<16x128xf32>
    %c8_i32_115 = arith.constant 8 : i32
    %409 = tpu.dynamic_rotate %403 by %c8_i32_115 dim 1 : vector<16x128xf32>, i32 -> vector<16x128xf32>
    %c13_116 = arith.constant 13 : index
    %410 = memref.load %arg6[%c13_116] : memref<18xf32, #tpu.memory_space<smem>>
    %411 = vector.broadcast %410 : f32 to vector<16x128xf32>
    %412 = arith.mulf %411, %409 : vector<16x128xf32>
    %413 = arith.addf %408, %412 : vector<16x128xf32>
    %c14_117 = arith.constant 14 : index
    %414 = memref.load %arg6[%c14_117] : memref<18xf32, #tpu.memory_space<smem>>
    %415 = vector.broadcast %414 : f32 to vector<16x128xf32>
    %416 = arith.mulf %415, %403 : vector<16x128xf32>
    %417 = arith.addf %413, %416 : vector<16x128xf32>
    %c16_i32_118 = arith.constant 16 : i32
    %418 = tpu.dynamic_rotate %341 by %c16_i32_118 dim 1 : vector<16x128xf32>, i32 -> vector<16x128xf32>
    %c15_119 = arith.constant 15 : index
    %419 = memref.load %arg6[%c15_119] : memref<18xf32, #tpu.memory_space<smem>>
    %420 = vector.broadcast %419 : f32 to vector<16x128xf32>
    %421 = arith.mulf %420, %418 : vector<16x128xf32>
    %422 = arith.addf %417, %421 : vector<16x128xf32>
    %c8_i32_120 = arith.constant 8 : i32
    %423 = tpu.dynamic_rotate %341 by %c8_i32_120 dim 1 : vector<16x128xf32>, i32 -> vector<16x128xf32>
    %c16_121 = arith.constant 16 : index
    %424 = memref.load %arg6[%c16_121] : memref<18xf32, #tpu.memory_space<smem>>
    %425 = vector.broadcast %424 : f32 to vector<16x128xf32>
    %426 = arith.mulf %425, %423 : vector<16x128xf32>
    %427 = arith.addf %422, %426 : vector<16x128xf32>
    %c17_122 = arith.constant 17 : index
    %428 = memref.load %arg6[%c17_122] : memref<18xf32, #tpu.memory_space<smem>>
    %429 = vector.broadcast %428 : f32 to vector<16x128xf32>
    %430 = arith.mulf %429, %341 : vector<16x128xf32>
    %431 = arith.addf %427, %430 : vector<16x128xf32>
    %432 = math.tanh %431 : vector<16x128xf32>
    %cst_123 = arith.constant 5.000000e-01 : f32
    %433 = vector.broadcast %cst_123 : f32 to vector<16x128xf32>
    %434 = arith.mulf %433, %432 : vector<16x128xf32>
    %cst_124 = arith.constant 5.000000e-01 : f32
    %435 = vector.broadcast %cst_124 : f32 to vector<16x128xf32>
    %436 = arith.addf %434, %435 : vector<16x128xf32>
    %437 = tpu.iota {dimensions = array<i32: 0>} : vector<16x128xi32>
    %438 = tpu.iota {dimensions = array<i32: 1>} : vector<16x128xi32>
    %c14_i32_125 = arith.constant 14 : i32
    %439 = vector.broadcast %c14_i32_125 : i32 to vector<16x128xi32>
    %440 = arith.cmpi slt, %437, %439 : vector<16x128xi32>
    %c112_i32_126 = arith.constant 112 : i32
    %441 = vector.broadcast %c112_i32_126 : i32 to vector<16x128xi32>
    %442 = arith.cmpi slt, %438, %441 : vector<16x128xi32>
    %443 = arith.andi %440, %442 : vector<16x128xi1>
    %cst_127 = arith.constant 0.000000e+00 : f32
    %444 = vector.broadcast %cst_127 : f32 to vector<16x128xf32>
    %445 = arith.select %443, %436, %444 : vector<16x128xi1>, vector<16x128xf32>
    %c0_128 = arith.constant 0 : index
    %446 = memref.load %arg9[%c0_128] : memref<5xf32, #tpu.memory_space<smem>>
    %447 = vector.broadcast %446 : f32 to vector<16x128xf32>
    %c1_129 = arith.constant 1 : index
    %448 = memref.load %arg9[%c1_129] : memref<5xf32, #tpu.memory_space<smem>>
    %449 = vector.broadcast %448 : f32 to vector<16x128xf32>
    %c2_130 = arith.constant 2 : index
    %450 = memref.load %arg9[%c2_130] : memref<5xf32, #tpu.memory_space<smem>>
    %451 = vector.broadcast %450 : f32 to vector<16x128xf32>
    %c3_131 = arith.constant 3 : index
    %452 = memref.load %arg9[%c3_131] : memref<5xf32, #tpu.memory_space<smem>>
    %453 = vector.broadcast %452 : f32 to vector<16x128xf32>
    %c4_132 = arith.constant 4 : index
    %454 = memref.load %arg9[%c4_132] : memref<5xf32, #tpu.memory_space<smem>>
    %455 = vector.broadcast %454 : f32 to vector<16x128xf32>
    %c2_i32_133 = arith.constant 2 : i32
    %456 = tpu.dynamic_rotate %445 by %c2_i32_133 dim 0 : vector<16x128xf32>, i32 -> vector<16x128xf32>
    %c16_i32_134 = arith.constant 16 : i32
    %457 = tpu.dynamic_rotate %456 by %c16_i32_134 dim 1 : vector<16x128xf32>, i32 -> vector<16x128xf32>
    %c0_135 = arith.constant 0 : index
    %458 = memref.load %arg8[%c0_135] : memref<45xf32, #tpu.memory_space<smem>>
    %459 = vector.broadcast %458 : f32 to vector<16x128xf32>
    %460 = arith.mulf %459, %457 : vector<16x128xf32>
    %461 = arith.addf %447, %460 : vector<16x128xf32>
    %c9_136 = arith.constant 9 : index
    %462 = memref.load %arg8[%c9_136] : memref<45xf32, #tpu.memory_space<smem>>
    %463 = vector.broadcast %462 : f32 to vector<16x128xf32>
    %464 = arith.mulf %463, %457 : vector<16x128xf32>
    %465 = arith.addf %449, %464 : vector<16x128xf32>
    %c18_137 = arith.constant 18 : index
    %466 = memref.load %arg8[%c18_137] : memref<45xf32, #tpu.memory_space<smem>>
    %467 = vector.broadcast %466 : f32 to vector<16x128xf32>
    %468 = arith.mulf %467, %457 : vector<16x128xf32>
    %469 = arith.addf %451, %468 : vector<16x128xf32>
    %c27_138 = arith.constant 27 : index
    %470 = memref.load %arg8[%c27_138] : memref<45xf32, #tpu.memory_space<smem>>
    %471 = vector.broadcast %470 : f32 to vector<16x128xf32>
    %472 = arith.mulf %471, %457 : vector<16x128xf32>
    %473 = arith.addf %453, %472 : vector<16x128xf32>
    %c36_139 = arith.constant 36 : index
    %474 = memref.load %arg8[%c36_139] : memref<45xf32, #tpu.memory_space<smem>>
    %475 = vector.broadcast %474 : f32 to vector<16x128xf32>
    %476 = arith.mulf %475, %457 : vector<16x128xf32>
    %477 = arith.addf %455, %476 : vector<16x128xf32>
    %c8_i32_140 = arith.constant 8 : i32
    %478 = tpu.dynamic_rotate %456 by %c8_i32_140 dim 1 : vector<16x128xf32>, i32 -> vector<16x128xf32>
    %c1_141 = arith.constant 1 : index
    %479 = memref.load %arg8[%c1_141] : memref<45xf32, #tpu.memory_space<smem>>
    %480 = vector.broadcast %479 : f32 to vector<16x128xf32>
    %481 = arith.mulf %480, %478 : vector<16x128xf32>
    %482 = arith.addf %461, %481 : vector<16x128xf32>
    %c10_142 = arith.constant 10 : index
    %483 = memref.load %arg8[%c10_142] : memref<45xf32, #tpu.memory_space<smem>>
    %484 = vector.broadcast %483 : f32 to vector<16x128xf32>
    %485 = arith.mulf %484, %478 : vector<16x128xf32>
    %486 = arith.addf %465, %485 : vector<16x128xf32>
    %c19_143 = arith.constant 19 : index
    %487 = memref.load %arg8[%c19_143] : memref<45xf32, #tpu.memory_space<smem>>
    %488 = vector.broadcast %487 : f32 to vector<16x128xf32>
    %489 = arith.mulf %488, %478 : vector<16x128xf32>
    %490 = arith.addf %469, %489 : vector<16x128xf32>
    %c28_144 = arith.constant 28 : index
    %491 = memref.load %arg8[%c28_144] : memref<45xf32, #tpu.memory_space<smem>>
    %492 = vector.broadcast %491 : f32 to vector<16x128xf32>
    %493 = arith.mulf %492, %478 : vector<16x128xf32>
    %494 = arith.addf %473, %493 : vector<16x128xf32>
    %c37_145 = arith.constant 37 : index
    %495 = memref.load %arg8[%c37_145] : memref<45xf32, #tpu.memory_space<smem>>
    %496 = vector.broadcast %495 : f32 to vector<16x128xf32>
    %497 = arith.mulf %496, %478 : vector<16x128xf32>
    %498 = arith.addf %477, %497 : vector<16x128xf32>
    %c2_146 = arith.constant 2 : index
    %499 = memref.load %arg8[%c2_146] : memref<45xf32, #tpu.memory_space<smem>>
    %500 = vector.broadcast %499 : f32 to vector<16x128xf32>
    %501 = arith.mulf %500, %456 : vector<16x128xf32>
    %502 = arith.addf %482, %501 : vector<16x128xf32>
    %c11_147 = arith.constant 11 : index
    %503 = memref.load %arg8[%c11_147] : memref<45xf32, #tpu.memory_space<smem>>
    %504 = vector.broadcast %503 : f32 to vector<16x128xf32>
    %505 = arith.mulf %504, %456 : vector<16x128xf32>
    %506 = arith.addf %486, %505 : vector<16x128xf32>
    %c20_148 = arith.constant 20 : index
    %507 = memref.load %arg8[%c20_148] : memref<45xf32, #tpu.memory_space<smem>>
    %508 = vector.broadcast %507 : f32 to vector<16x128xf32>
    %509 = arith.mulf %508, %456 : vector<16x128xf32>
    %510 = arith.addf %490, %509 : vector<16x128xf32>
    %c29_149 = arith.constant 29 : index
    %511 = memref.load %arg8[%c29_149] : memref<45xf32, #tpu.memory_space<smem>>
    %512 = vector.broadcast %511 : f32 to vector<16x128xf32>
    %513 = arith.mulf %512, %456 : vector<16x128xf32>
    %514 = arith.addf %494, %513 : vector<16x128xf32>
    %c38_150 = arith.constant 38 : index
    %515 = memref.load %arg8[%c38_150] : memref<45xf32, #tpu.memory_space<smem>>
    %516 = vector.broadcast %515 : f32 to vector<16x128xf32>
    %517 = arith.mulf %516, %456 : vector<16x128xf32>
    %518 = arith.addf %498, %517 : vector<16x128xf32>
    %c1_i32_151 = arith.constant 1 : i32
    %519 = tpu.dynamic_rotate %445 by %c1_i32_151 dim 0 : vector<16x128xf32>, i32 -> vector<16x128xf32>
    %c16_i32_152 = arith.constant 16 : i32
    %520 = tpu.dynamic_rotate %519 by %c16_i32_152 dim 1 : vector<16x128xf32>, i32 -> vector<16x128xf32>
    %c3_153 = arith.constant 3 : index
    %521 = memref.load %arg8[%c3_153] : memref<45xf32, #tpu.memory_space<smem>>
    %522 = vector.broadcast %521 : f32 to vector<16x128xf32>
    %523 = arith.mulf %522, %520 : vector<16x128xf32>
    %524 = arith.addf %502, %523 : vector<16x128xf32>
    %c12_154 = arith.constant 12 : index
    %525 = memref.load %arg8[%c12_154] : memref<45xf32, #tpu.memory_space<smem>>
    %526 = vector.broadcast %525 : f32 to vector<16x128xf32>
    %527 = arith.mulf %526, %520 : vector<16x128xf32>
    %528 = arith.addf %506, %527 : vector<16x128xf32>
    %c21_155 = arith.constant 21 : index
    %529 = memref.load %arg8[%c21_155] : memref<45xf32, #tpu.memory_space<smem>>
    %530 = vector.broadcast %529 : f32 to vector<16x128xf32>
    %531 = arith.mulf %530, %520 : vector<16x128xf32>
    %532 = arith.addf %510, %531 : vector<16x128xf32>
    %c30_156 = arith.constant 30 : index
    %533 = memref.load %arg8[%c30_156] : memref<45xf32, #tpu.memory_space<smem>>
    %534 = vector.broadcast %533 : f32 to vector<16x128xf32>
    %535 = arith.mulf %534, %520 : vector<16x128xf32>
    %536 = arith.addf %514, %535 : vector<16x128xf32>
    %c39_157 = arith.constant 39 : index
    %537 = memref.load %arg8[%c39_157] : memref<45xf32, #tpu.memory_space<smem>>
    %538 = vector.broadcast %537 : f32 to vector<16x128xf32>
    %539 = arith.mulf %538, %520 : vector<16x128xf32>
    %540 = arith.addf %518, %539 : vector<16x128xf32>
    %c8_i32_158 = arith.constant 8 : i32
    %541 = tpu.dynamic_rotate %519 by %c8_i32_158 dim 1 : vector<16x128xf32>, i32 -> vector<16x128xf32>
    %c4_159 = arith.constant 4 : index
    %542 = memref.load %arg8[%c4_159] : memref<45xf32, #tpu.memory_space<smem>>
    %543 = vector.broadcast %542 : f32 to vector<16x128xf32>
    %544 = arith.mulf %543, %541 : vector<16x128xf32>
    %545 = arith.addf %524, %544 : vector<16x128xf32>
    %c13_160 = arith.constant 13 : index
    %546 = memref.load %arg8[%c13_160] : memref<45xf32, #tpu.memory_space<smem>>
    %547 = vector.broadcast %546 : f32 to vector<16x128xf32>
    %548 = arith.mulf %547, %541 : vector<16x128xf32>
    %549 = arith.addf %528, %548 : vector<16x128xf32>
    %c22_161 = arith.constant 22 : index
    %550 = memref.load %arg8[%c22_161] : memref<45xf32, #tpu.memory_space<smem>>
    %551 = vector.broadcast %550 : f32 to vector<16x128xf32>
    %552 = arith.mulf %551, %541 : vector<16x128xf32>
    %553 = arith.addf %532, %552 : vector<16x128xf32>
    %c31_162 = arith.constant 31 : index
    %554 = memref.load %arg8[%c31_162] : memref<45xf32, #tpu.memory_space<smem>>
    %555 = vector.broadcast %554 : f32 to vector<16x128xf32>
    %556 = arith.mulf %555, %541 : vector<16x128xf32>
    %557 = arith.addf %536, %556 : vector<16x128xf32>
    %c40_163 = arith.constant 40 : index
    %558 = memref.load %arg8[%c40_163] : memref<45xf32, #tpu.memory_space<smem>>
    %559 = vector.broadcast %558 : f32 to vector<16x128xf32>
    %560 = arith.mulf %559, %541 : vector<16x128xf32>
    %561 = arith.addf %540, %560 : vector<16x128xf32>
    %c5_164 = arith.constant 5 : index
    %562 = memref.load %arg8[%c5_164] : memref<45xf32, #tpu.memory_space<smem>>
    %563 = vector.broadcast %562 : f32 to vector<16x128xf32>
    %564 = arith.mulf %563, %519 : vector<16x128xf32>
    %565 = arith.addf %545, %564 : vector<16x128xf32>
    %c14_165 = arith.constant 14 : index
    %566 = memref.load %arg8[%c14_165] : memref<45xf32, #tpu.memory_space<smem>>
    %567 = vector.broadcast %566 : f32 to vector<16x128xf32>
    %568 = arith.mulf %567, %519 : vector<16x128xf32>
    %569 = arith.addf %549, %568 : vector<16x128xf32>
    %c23_166 = arith.constant 23 : index
    %570 = memref.load %arg8[%c23_166] : memref<45xf32, #tpu.memory_space<smem>>
    %571 = vector.broadcast %570 : f32 to vector<16x128xf32>
    %572 = arith.mulf %571, %519 : vector<16x128xf32>
    %573 = arith.addf %553, %572 : vector<16x128xf32>
    %c32_167 = arith.constant 32 : index
    %574 = memref.load %arg8[%c32_167] : memref<45xf32, #tpu.memory_space<smem>>
    %575 = vector.broadcast %574 : f32 to vector<16x128xf32>
    %576 = arith.mulf %575, %519 : vector<16x128xf32>
    %577 = arith.addf %557, %576 : vector<16x128xf32>
    %c41_168 = arith.constant 41 : index
    %578 = memref.load %arg8[%c41_168] : memref<45xf32, #tpu.memory_space<smem>>
    %579 = vector.broadcast %578 : f32 to vector<16x128xf32>
    %580 = arith.mulf %579, %519 : vector<16x128xf32>
    %581 = arith.addf %561, %580 : vector<16x128xf32>
    %c16_i32_169 = arith.constant 16 : i32
    %582 = tpu.dynamic_rotate %445 by %c16_i32_169 dim 1 : vector<16x128xf32>, i32 -> vector<16x128xf32>
    %c6_170 = arith.constant 6 : index
    %583 = memref.load %arg8[%c6_170] : memref<45xf32, #tpu.memory_space<smem>>
    %584 = vector.broadcast %583 : f32 to vector<16x128xf32>
    %585 = arith.mulf %584, %582 : vector<16x128xf32>
    %586 = arith.addf %565, %585 : vector<16x128xf32>
    %c15_171 = arith.constant 15 : index
    %587 = memref.load %arg8[%c15_171] : memref<45xf32, #tpu.memory_space<smem>>
    %588 = vector.broadcast %587 : f32 to vector<16x128xf32>
    %589 = arith.mulf %588, %582 : vector<16x128xf32>
    %590 = arith.addf %569, %589 : vector<16x128xf32>
    %c24_172 = arith.constant 24 : index
    %591 = memref.load %arg8[%c24_172] : memref<45xf32, #tpu.memory_space<smem>>
    %592 = vector.broadcast %591 : f32 to vector<16x128xf32>
    %593 = arith.mulf %592, %582 : vector<16x128xf32>
    %594 = arith.addf %573, %593 : vector<16x128xf32>
    %c33_173 = arith.constant 33 : index
    %595 = memref.load %arg8[%c33_173] : memref<45xf32, #tpu.memory_space<smem>>
    %596 = vector.broadcast %595 : f32 to vector<16x128xf32>
    %597 = arith.mulf %596, %582 : vector<16x128xf32>
    %598 = arith.addf %577, %597 : vector<16x128xf32>
    %c42_174 = arith.constant 42 : index
    %599 = memref.load %arg8[%c42_174] : memref<45xf32, #tpu.memory_space<smem>>
    %600 = vector.broadcast %599 : f32 to vector<16x128xf32>
    %601 = arith.mulf %600, %582 : vector<16x128xf32>
    %602 = arith.addf %581, %601 : vector<16x128xf32>
    %c8_i32_175 = arith.constant 8 : i32
    %603 = tpu.dynamic_rotate %445 by %c8_i32_175 dim 1 : vector<16x128xf32>, i32 -> vector<16x128xf32>
    %c7_176 = arith.constant 7 : index
    %604 = memref.load %arg8[%c7_176] : memref<45xf32, #tpu.memory_space<smem>>
    %605 = vector.broadcast %604 : f32 to vector<16x128xf32>
    %606 = arith.mulf %605, %603 : vector<16x128xf32>
    %607 = arith.addf %586, %606 : vector<16x128xf32>
    %c16_177 = arith.constant 16 : index
    %608 = memref.load %arg8[%c16_177] : memref<45xf32, #tpu.memory_space<smem>>
    %609 = vector.broadcast %608 : f32 to vector<16x128xf32>
    %610 = arith.mulf %609, %603 : vector<16x128xf32>
    %611 = arith.addf %590, %610 : vector<16x128xf32>
    %c25_178 = arith.constant 25 : index
    %612 = memref.load %arg8[%c25_178] : memref<45xf32, #tpu.memory_space<smem>>
    %613 = vector.broadcast %612 : f32 to vector<16x128xf32>
    %614 = arith.mulf %613, %603 : vector<16x128xf32>
    %615 = arith.addf %594, %614 : vector<16x128xf32>
    %c34_179 = arith.constant 34 : index
    %616 = memref.load %arg8[%c34_179] : memref<45xf32, #tpu.memory_space<smem>>
    %617 = vector.broadcast %616 : f32 to vector<16x128xf32>
    %618 = arith.mulf %617, %603 : vector<16x128xf32>
    %619 = arith.addf %598, %618 : vector<16x128xf32>
    %c43_180 = arith.constant 43 : index
    %620 = memref.load %arg8[%c43_180] : memref<45xf32, #tpu.memory_space<smem>>
    %621 = vector.broadcast %620 : f32 to vector<16x128xf32>
    %622 = arith.mulf %621, %603 : vector<16x128xf32>
    %623 = arith.addf %602, %622 : vector<16x128xf32>
    %c8_181 = arith.constant 8 : index
    %624 = memref.load %arg8[%c8_181] : memref<45xf32, #tpu.memory_space<smem>>
    %625 = vector.broadcast %624 : f32 to vector<16x128xf32>
    %626 = arith.mulf %625, %445 : vector<16x128xf32>
    %627 = arith.addf %607, %626 : vector<16x128xf32>
    %c17_182 = arith.constant 17 : index
    %628 = memref.load %arg8[%c17_182] : memref<45xf32, #tpu.memory_space<smem>>
    %629 = vector.broadcast %628 : f32 to vector<16x128xf32>
    %630 = arith.mulf %629, %445 : vector<16x128xf32>
    %631 = arith.addf %611, %630 : vector<16x128xf32>
    %c26_183 = arith.constant 26 : index
    %632 = memref.load %arg8[%c26_183] : memref<45xf32, #tpu.memory_space<smem>>
    %633 = vector.broadcast %632 : f32 to vector<16x128xf32>
    %634 = arith.mulf %633, %445 : vector<16x128xf32>
    %635 = arith.addf %615, %634 : vector<16x128xf32>
    %c35_184 = arith.constant 35 : index
    %636 = memref.load %arg8[%c35_184] : memref<45xf32, #tpu.memory_space<smem>>
    %637 = vector.broadcast %636 : f32 to vector<16x128xf32>
    %638 = arith.mulf %637, %445 : vector<16x128xf32>
    %639 = arith.addf %619, %638 : vector<16x128xf32>
    %c44_185 = arith.constant 44 : index
    %640 = memref.load %arg8[%c44_185] : memref<45xf32, #tpu.memory_space<smem>>
    %641 = vector.broadcast %640 : f32 to vector<16x128xf32>
    %642 = arith.mulf %641, %445 : vector<16x128xf32>
    %643 = arith.addf %623, %642 : vector<16x128xf32>
    %644 = math.tanh %627 : vector<16x128xf32>
    %cst_186 = arith.constant 5.000000e-01 : f32
    %645 = vector.broadcast %cst_186 : f32 to vector<16x128xf32>
    %646 = arith.mulf %645, %644 : vector<16x128xf32>
    %cst_187 = arith.constant 5.000000e-01 : f32
    %647 = vector.broadcast %cst_187 : f32 to vector<16x128xf32>
    %648 = arith.addf %646, %647 : vector<16x128xf32>
    %649 = math.tanh %631 : vector<16x128xf32>
    %cst_188 = arith.constant 5.000000e-01 : f32
    %650 = vector.broadcast %cst_188 : f32 to vector<16x128xf32>
    %651 = arith.mulf %650, %649 : vector<16x128xf32>
    %cst_189 = arith.constant 5.000000e-01 : f32
    %652 = vector.broadcast %cst_189 : f32 to vector<16x128xf32>
    %653 = arith.addf %651, %652 : vector<16x128xf32>
    %654 = math.tanh %635 : vector<16x128xf32>
    %cst_190 = arith.constant 5.000000e-01 : f32
    %655 = vector.broadcast %cst_190 : f32 to vector<16x128xf32>
    %656 = arith.mulf %655, %654 : vector<16x128xf32>
    %cst_191 = arith.constant 5.000000e-01 : f32
    %657 = vector.broadcast %cst_191 : f32 to vector<16x128xf32>
    %658 = arith.addf %656, %657 : vector<16x128xf32>
    %659 = math.tanh %639 : vector<16x128xf32>
    %cst_192 = arith.constant 5.000000e-01 : f32
    %660 = vector.broadcast %cst_192 : f32 to vector<16x128xf32>
    %661 = arith.mulf %660, %659 : vector<16x128xf32>
    %cst_193 = arith.constant 5.000000e-01 : f32
    %662 = vector.broadcast %cst_193 : f32 to vector<16x128xf32>
    %663 = arith.addf %661, %662 : vector<16x128xf32>
    %664 = math.tanh %643 : vector<16x128xf32>
    %cst_194 = arith.constant 5.000000e-01 : f32
    %665 = vector.broadcast %cst_194 : f32 to vector<16x128xf32>
    %666 = arith.mulf %665, %664 : vector<16x128xf32>
    %cst_195 = arith.constant 5.000000e-01 : f32
    %667 = vector.broadcast %cst_195 : f32 to vector<16x128xf32>
    %668 = arith.addf %666, %667 : vector<16x128xf32>
    %c0_196 = arith.constant 0 : index
    %c0_197 = arith.constant 0 : index
    %c0_198 = arith.constant 0 : index
    %c0_199 = arith.constant 0 : index
    %669 = vector.load %arg10[%c0_196, %c0_197, %c0_198, %c0_199] : memref<1x5x16x128xf32, #tpu.memory_space<vmem>>, vector<1x1x16x128xf32>
    %670 = vector.shape_cast %669 : vector<1x1x16x128xf32> to vector<16x128xf32>
    %671 = vector.shape_cast %648 : vector<16x128xf32> to vector<1x1x16x128xf32>
    tpu.vector_store %arg10[%c0_196, %c0_197, %c0_198, %c0_199], %671 {strides = array<i32>} : memref<1x5x16x128xf32, #tpu.memory_space<vmem>>, vector<1x1x16x128xf32>,
    %c0_200 = arith.constant 0 : index
    %c1_201 = arith.constant 1 : index
    %c0_202 = arith.constant 0 : index
    %c0_203 = arith.constant 0 : index
    %672 = vector.load %arg10[%c0_200, %c1_201, %c0_202, %c0_203] : memref<1x5x16x128xf32, #tpu.memory_space<vmem>>, vector<1x1x16x128xf32>
    %673 = vector.shape_cast %672 : vector<1x1x16x128xf32> to vector<16x128xf32>
    %674 = vector.shape_cast %653 : vector<16x128xf32> to vector<1x1x16x128xf32>
    tpu.vector_store %arg10[%c0_200, %c1_201, %c0_202, %c0_203], %674 {strides = array<i32>} : memref<1x5x16x128xf32, #tpu.memory_space<vmem>>, vector<1x1x16x128xf32>,
    %c0_204 = arith.constant 0 : index
    %c2_205 = arith.constant 2 : index
    %c0_206 = arith.constant 0 : index
    %c0_207 = arith.constant 0 : index
    %675 = vector.load %arg10[%c0_204, %c2_205, %c0_206, %c0_207] : memref<1x5x16x128xf32, #tpu.memory_space<vmem>>, vector<1x1x16x128xf32>
    %676 = vector.shape_cast %675 : vector<1x1x16x128xf32> to vector<16x128xf32>
    %677 = vector.shape_cast %658 : vector<16x128xf32> to vector<1x1x16x128xf32>
    tpu.vector_store %arg10[%c0_204, %c2_205, %c0_206, %c0_207], %677 {strides = array<i32>} : memref<1x5x16x128xf32, #tpu.memory_space<vmem>>, vector<1x1x16x128xf32>,
    %c0_208 = arith.constant 0 : index
    %c3_209 = arith.constant 3 : index
    %c0_210 = arith.constant 0 : index
    %c0_211 = arith.constant 0 : index
    %678 = vector.load %arg10[%c0_208, %c3_209, %c0_210, %c0_211] : memref<1x5x16x128xf32, #tpu.memory_space<vmem>>, vector<1x1x16x128xf32>
    %679 = vector.shape_cast %678 : vector<1x1x16x128xf32> to vector<16x128xf32>
    %680 = vector.shape_cast %663 : vector<16x128xf32> to vector<1x1x16x128xf32>
    tpu.vector_store %arg10[%c0_208, %c3_209, %c0_210, %c0_211], %680 {strides = array<i32>} : memref<1x5x16x128xf32, #tpu.memory_space<vmem>>, vector<1x1x16x128xf32>,
    %c0_212 = arith.constant 0 : index
    %c4_213 = arith.constant 4 : index
    %c0_214 = arith.constant 0 : index
    %c0_215 = arith.constant 0 : index
    %681 = vector.load %arg10[%c0_212, %c4_213, %c0_214, %c0_215] : memref<1x5x16x128xf32, #tpu.memory_space<vmem>>, vector<1x1x16x128xf32>
    %682 = vector.shape_cast %681 : vector<1x1x16x128xf32> to vector<16x128xf32>
    %683 = vector.shape_cast %668 : vector<16x128xf32> to vector<1x1x16x128xf32>
    tpu.vector_store %arg10[%c0_212, %c4_213, %c0_214, %c0_215], %683 {strides = array<i32>} : memref<1x5x16x128xf32, #tpu.memory_space<vmem>>, vector<1x1x16x128xf32>,
    return
  }
  func.func @transform_0(%arg0: i32) -> (i32, i32, i32, i32) {
    %c0_i32 = arith.constant 0 : i32
    %c0_i32_0 = arith.constant 0 : i32
    %c0_i32_1 = arith.constant 0 : i32
    %c0_i32_2 = arith.constant 0 : i32
    return %arg0, %c0_i32, %c0_i32_0, %c0_i32_1 : i32, i32, i32, i32
  }
  func.func @transform_1(%arg0: i32) -> i32 {
    %c0_i32 = arith.constant 0 : i32
    %c0_i32_0 = arith.constant 0 : i32
    return %c0_i32 : i32
  }
  func.func @transform_2(%arg0: i32) -> i32 {
    %c0_i32 = arith.constant 0 : i32
    %c0_i32_0 = arith.constant 0 : i32
    return %c0_i32 : i32
  }
  func.func @transform_3(%arg0: i32) -> i32 {
    %c0_i32 = arith.constant 0 : i32
    %c0_i32_0 = arith.constant 0 : i32
    return %c0_i32 : i32
  }
  func.func @transform_4(%arg0: i32) -> i32 {
    %c0_i32 = arith.constant 0 : i32
    %c0_i32_0 = arith.constant 0 : i32
    return %c0_i32 : i32
  }
  func.func @transform_5(%arg0: i32) -> i32 {
    %c0_i32 = arith.constant 0 : i32
    %c0_i32_0 = arith.constant 0 : i32
    return %c0_i32 : i32
  }
  func.func @transform_6(%arg0: i32) -> i32 {
    %c0_i32 = arith.constant 0 : i32
    %c0_i32_0 = arith.constant 0 : i32
    return %c0_i32 : i32
  }
  func.func @transform_7(%arg0: i32) -> i32 {
    %c0_i32 = arith.constant 0 : i32
    %c0_i32_0 = arith.constant 0 : i32
    return %c0_i32 : i32
  }
  func.func @transform_8(%arg0: i32) -> i32 {
    %c0_i32 = arith.constant 0 : i32
    %c0_i32_0 = arith.constant 0 : i32
    return %c0_i32 : i32
  }
  func.func @transform_9(%arg0: i32) -> (i32, i32, i32, i32) {
    %c0_i32 = arith.constant 0 : i32
    %c0_i32_0 = arith.constant 0 : i32
    %c0_i32_1 = arith.constant 0 : i32
    %c0_i32_2 = arith.constant 0 : i32
    return %arg0, %c0_i32, %c0_i32_0, %c0_i32_1 : i32, i32, i32, i32
  }
}

</mosaic_0001>

<llo_original>
// kernel: autoencoder_forward_pallas.1
$region0: #{autoencoder_forward_pallas.1}
  #allocation0 [shape = 'u32[]', space=smem, size = 0x4, offset = 0x4, fixed_abs, tag = 'smem constant byte address 0x4 - core index']
  #allocation1 [shape = 'u32[144,128]{1,0:T(1,128)}', space=vmem, size = 0x12000, scoped, tag = 'internal scratch']
  #allocation2 [shape = 'f32[1]{0:T(128)S(6)}', space=smem, size = 0x200, scoped, tag = 'scoped memory for autoencoder_forward_pallas.1']
  #allocation3 [shape = 'f32[1]{0:T(128)S(6)}', space=smem, size = 0x200, scoped, tag = 'scoped memory for autoencoder_forward_pallas.1']
  %s0 = inlined_call_operand.vmem [shape: f32[2,5,16,128], index: 0, kind: input, shape index: {}]
  %s1 = inlined_call_operand.vmem [shape: f32[45], index: 1, kind: input, shape index: {}]
  %s2 = inlined_call_operand.<no memory space> [shape: f32[1], index: 2, kind: input, shape index: {}]
  %s3 = inlined_call_operand.vmem [shape: f32[18], index: 3, kind: input, shape index: {}]
  %s4 = inlined_call_operand.vmem [shape: f32[2], index: 4, kind: input, shape index: {}]
  %s5 = inlined_call_operand.vmem [shape: f32[18], index: 5, kind: input, shape index: {}]
  %s6 = inlined_call_operand.<no memory space> [shape: f32[1], index: 6, kind: input, shape index: {}]
  %s7 = inlined_call_operand.vmem [shape: f32[45], index: 7, kind: input, shape index: {}]
  %s8 = inlined_call_operand.vmem [shape: f32[5], index: 8, kind: input, shape index: {}]
  %s9 = inlined_call_operand.vmem [shape: f32[2,5,16,128], index: 9, kind: output, shape index: {}]
  %s10 = sld [smem:[#allocation0]]
  $region93: #{autoencoder_forward_pallas.1} parent=0
    _
  %s12 = ssub.s32 1, %s10
  %s13 = scalar_select 0, %s12, %s10
  %14 = sst [smem:[#allocation2]] %s2
  %15 = sst [smem:[#allocation3]] %s6
  $region1: #{autoencoder_forward_pallas.1} parent=0
    #allocation4 [shape = 'u8[512]{0}', space=smem, size = 0x200, scoped, tag = 'input window, operand 1, single buffered']
    #allocation5 [shape = 's32[2]{0}', space=sflag, size = 0x8, scoped, tag = 'scoped memory for autoencoder_forward_pallas.1']
    #allocation6 [shape = 'u8[512]{0}', space=smem, size = 0x200, scoped, tag = 'input window, operand 3, single buffered']
    #allocation7 [shape = 's32[1]{0}', space=sflag, size = 0x4, scoped, tag = 'scoped memory for autoencoder_forward_pallas.1']
    #allocation8 [shape = 'u8[512]{0}', space=smem, size = 0x200, scoped, tag = 'input window, operand 4, single buffered']
    #allocation9 [shape = 'u8[512]{0}', space=smem, size = 0x200, scoped, tag = 'input window, operand 5, single buffered']
    #allocation10 [shape = 's32[1]{0}', space=sflag, size = 0x4, scoped, tag = 'scoped memory for autoencoder_forward_pallas.1']
    #allocation11 [shape = 'u8[512]{0}', space=smem, size = 0x200, scoped, tag = 'input window, operand 7, single buffered']
    #allocation12 [shape = 'u8[512]{0}', space=smem, size = 0x200, scoped, tag = 'input window, operand 8, single buffered']
    #allocation13 [shape = 's32[1]{0}', space=sflag, size = 0x4, scoped, tag = 'scoped memory for autoencoder_forward_pallas.1']
    %16 = vsyncpa [#allocation5], 0
    %17 = vsyncpa [#allocation7], 0
    %18 = vsyncpa [#allocation10], 0
    %19 = vsyncpa [#allocation13], 0
    loop: start=0, step=1, limit=4
    $region2: #{autoencoder_forward_pallas.1} parent=1 // loop_pre_header
      _
    $region3: #{autoencoder_forward_pallas.1} parent=1 // loop_header
      %s21 = sphi 0, %s25
      %p22 = scmp.ge.s32.totalorder %s21, 4
      %s31 = sphi 0, %s33
      %s34 = sphi 0, %s31
      %s35 = sphi 0, %s34
      %s51 = sphi 0, %s35
      %s55 = sphi 0, %s55
      %s57 = sphi 0, %s55
      %s58 = sphi 0, %s57
      %s72 = sphi 0, %s58
      %s76 = sphi 0, %s76
      %s78 = sphi 0, %s76
      %s79 = sphi 0, %s78
      %s93 = sphi 0, %s79
      %s97 = sphi 0, %s97
      %s99 = sphi 0, %s97
      %s100 = sphi 0, %s99
      %s114 = sphi 0, %s100
      %s118 = sphi 0, %s118
      %s120 = sphi 0, %s118
      %s121 = sphi 0, %s120
      %s135 = sphi 0, %s121
      %s139 = sphi 0, %s139
      %s141 = sphi 0, %s139
      %s142 = sphi 0, %s141
      %s156 = sphi 0, %s142
      %s160 = sphi 0, %s160
      %s162 = sphi 0, %s160
      %s163 = sphi 0, %s162
      %s177 = sphi 0, %s163
      %s181 = sphi 0, %s181
      %s183 = sphi 0, %s181
      %s184 = sphi 0, %s183
      %s198 = sphi 0, %s184
      %s202 = sphi 0, %s202
      %s204 = sphi 0, %s202
      %s205 = sphi 0, %s204
      %s219 = sphi 0, %s205
      %s225 = sphi 0, %s227
      %s228 = sphi 0, %s225
      %s229 = sphi 0, %s228
      %s245 = sphi 0, %s229
    $region4: #{autoencoder_forward_pallas.1} parent=1 // loop_header_branch
      %24 = sbr.rel (%p22) target = $region8
    $region5: #{autoencoder_forward_pallas.1} parent=1 // loop_body
      %s26 = ssub.s32 %s21, 1
      %s27 = ssub.s32 %s21, 2
      %s28 = sadd.s32 %s21, 1
      %s29 = ssub.s32 %s21, %s28
      %p30 = scmp.eq.s32.totalorder %s29, 0
      %s32 = sadd.s32 %s31, 1
      %s33 = scalar_select %p30, %s31, %s32
      %p36 = pneg %p30
      %p37 = scmp.eq.s32.totalorder %s21, 1
      %p38 = por %p36, %p37
      %p39 = scmp.ne.s32.totalorder %s31, %s34
      %p40 = scmp.eq.s32.totalorder %s21, 0
      %p41 = por %p39, %p40
      %p42 = scmp.ne.s32.totalorder %s31, %s34
      %p43 = scmp.eq.s32.totalorder %s26, 1
      %p44 = por %p42, %p43
      %p45 = scmp.ne.s32.totalorder %s34, %s35
      %p46 = scmp.eq.s32.totalorder %s26, 0
      %p47 = por %p45, %p46
      %p48 = scmp.ne.s32.totalorder %s34, %s35
      %p49 = scmp.eq.s32.totalorder %s27, 1
      %p50 = por %p48, %p49
      %p52 = scmp.ne.s32.totalorder %s35, %s51
      %p53 = scmp.eq.s32.totalorder %s27, 0
      %p54 = por %p52, %p53
      %s56 = sadd.s32 %s55, 1
      %p59 = scmp.eq.s32.totalorder %s21, 1
      %p60 = scmp.ne.s32.totalorder %s55, %s57
      %p61 = scmp.eq.s32.totalorder %s21, 0
      %p62 = por %p60, %p61
      %p63 = scmp.ne.s32.totalorder %s55, %s57
      %p64 = scmp.eq.s32.totalorder %s26, 1
      %p65 = por %p63, %p64
      %p66 = scmp.ne.s32.totalorder %s57, %s58
      %p67 = scmp.eq.s32.totalorder %s26, 0
      %p68 = por %p66, %p67
      %p69 = scmp.ne.s32.totalorder %s57, %s58
      %p70 = scmp.eq.s32.totalorder %s27, 1
      %p71 = por %p69, %p70
      %p73 = scmp.ne.s32.totalorder %s58, %s72
      %p74 = scmp.eq.s32.totalorder %s27, 0
      %p75 = por %p73, %p74
      %s77 = sadd.s32 %s76, 1
      %p80 = scmp.eq.s32.totalorder %s21, 1
      %p81 = scmp.ne.s32.totalorder %s76, %s78
      %p82 = scmp.eq.s32.totalorder %s21, 0
      %p83 = por %p81, %p82
      %p84 = scmp.ne.s32.totalorder %s76, %s78
      %p85 = scmp.eq.s32.totalorder %s26, 1
      %p86 = por %p84, %p85
      %p87 = scmp.ne.s32.totalorder %s78, %s79
      %p88 = scmp.eq.s32.totalorder %s26, 0
      %p89 = por %p87, %p88
      %p90 = scmp.ne.s32.totalorder %s78, %s79
      %p91 = scmp.eq.s32.totalorder %s27, 1
      %p92 = por %p90, %p91
      %p94 = scmp.ne.s32.totalorder %s79, %s93
      %p95 = scmp.eq.s32.totalorder %s27, 0
      %p96 = por %p94, %p95
      %s98 = sadd.s32 %s97, 1
      %p101 = scmp.eq.s32.totalorder %s21, 1
      %p102 = scmp.ne.s32.totalorder %s97, %s99
      %p103 = scmp.eq.s32.totalorder %s21, 0
      %p104 = por %p102, %p103
      %p105 = scmp.ne.s32.totalorder %s97, %s99
      %p106 = scmp.eq.s32.totalorder %s26, 1
      %p107 = por %p105, %p106
      %p108 = scmp.ne.s32.totalorder %s99, %s100
      %p109 = scmp.eq.s32.totalorder %s26, 0
      %p110 = por %p108, %p109
      %p111 = scmp.ne.s32.totalorder %s99, %s100
      %p112 = scmp.eq.s32.totalorder %s27, 1
      %p113 = por %p111, %p112
      %p115 = scmp.ne.s32.totalorder %s100, %s114
      %p116 = scmp.eq.s32.totalorder %s27, 0
      %p117 = por %p115, %p116
      %s119 = sadd.s32 %s118, 1
      %p122 = scmp.eq.s32.totalorder %s21, 1
      %p123 = scmp.ne.s32.totalorder %s118, %s120
      %p124 = scmp.eq.s32.totalorder %s21, 0
      %p125 = por %p123, %p124
      %p126 = scmp.ne.s32.totalorder %s118, %s120
      %p127 = scmp.eq.s32.totalorder %s26, 1
      %p128 = por %p126, %p127
      %p129 = scmp.ne.s32.totalorder %s120, %s121
      %p130 = scmp.eq.s32.totalorder %s26, 0
      %p131 = por %p129, %p130
      %p132 = scmp.ne.s32.totalorder %s120, %s121
      %p133 = scmp.eq.s32.totalorder %s27, 1
      %p134 = por %p132, %p133
      %p136 = scmp.ne.s32.totalorder %s121, %s135
      %p137 = scmp.eq.s32.totalorder %s27, 0
      %p138 = por %p136, %p137
      %s140 = sadd.s32 %s139, 1
      %p143 = scmp.eq.s32.totalorder %s21, 1
      %p144 = scmp.ne.s32.totalorder %s139, %s141
      %p145 = scmp.eq.s32.totalorder %s21, 0
      %p146 = por %p144, %p145
      %p147 = scmp.ne.s32.totalorder %s139, %s141
      %p148 = scmp.eq.s32.totalorder %s26, 1
      %p149 = por %p147, %p148
      %p150 = scmp.ne.s32.totalorder %s141, %s142
      %p151 = scmp.eq.s32.totalorder %s26, 0
      %p152 = por %p150, %p151
      %p153 = scmp.ne.s32.totalorder %s141, %s142
      %p154 = scmp.eq.s32.totalorder %s27, 1
      %p155 = por %p153, %p154
      %p157 = scmp.ne.s32.totalorder %s142, %s156
      %p158 = scmp.eq.s32.totalorder %s27, 0
      %p159 = por %p157, %p158
      %s161 = sadd.s32 %s160, 1
      %p164 = scmp.eq.s32.totalorder %s21, 1
      %p165 = scmp.ne.s32.totalorder %s160, %s162
      %p166 = scmp.eq.s32.totalorder %s21, 0
      %p167 = por %p165, %p166
      %p168 = scmp.ne.s32.totalorder %s160, %s162
      %p169 = scmp.eq.s32.totalorder %s26, 1
      %p170 = por %p168, %p169
      %p171 = scmp.ne.s32.totalorder %s162, %s163
      %p172 = scmp.eq.s32.totalorder %s26, 0
      %p173 = por %p171, %p172
      %p174 = scmp.ne.s32.totalorder %s162, %s163
      %p175 = scmp.eq.s32.totalorder %s27, 1
      %p176 = por %p174, %p175
      %p178 = scmp.ne.s32.totalorder %s163, %s177
      %p179 = scmp.eq.s32.totalorder %s27, 0
      %p180 = por %p178, %p179
      %s182 = sadd.s32 %s181, 1
      %p185 = scmp.eq.s32.totalorder %s21, 1
      %p186 = scmp.ne.s32.totalorder %s181, %s183
      %p187 = scmp.eq.s32.totalorder %s21, 0
      %p188 = por %p186, %p187
      %p189 = scmp.ne.s32.totalorder %s181, %s183
      %p190 = scmp.eq.s32.totalorder %s26, 1
      %p191 = por %p189, %p190
      %p192 = scmp.ne.s32.totalorder %s183, %s184
      %p193 = scmp.eq.s32.totalorder %s26, 0
      %p194 = por %p192, %p193
      %p195 = scmp.ne.s32.totalorder %s183, %s184
      %p196 = scmp.eq.s32.totalorder %s27, 1
      %p197 = por %p195, %p196
      %p199 = scmp.ne.s32.totalorder %s184, %s198
      %p200 = scmp.eq.s32.totalorder %s27, 0
      %p201 = por %p199, %p200
      %s203 = sadd.s32 %s202, 1
      %p206 = scmp.eq.s32.totalorder %s21, 1
      %p207 = scmp.ne.s32.totalorder %s202, %s204
      %p208 = scmp.eq.s32.totalorder %s21, 0
      %p209 = por %p207, %p208
      %p210 = scmp.ne.s32.totalorder %s202, %s204
      %p211 = scmp.eq.s32.totalorder %s26, 1
      %p212 = por %p210, %p211
      %p213 = scmp.ne.s32.totalorder %s204, %s205
      %p214 = scmp.eq.s32.totalorder %s26, 0
      %p215 = por %p213, %p214
      %p216 = scmp.ne.s32.totalorder %s204, %s205
      %p217 = scmp.eq.s32.totalorder %s27, 1
      %p218 = por %p216, %p217
      %p220 = scmp.ne.s32.totalorder %s205, %s219
      %p221 = scmp.eq.s32.totalorder %s27, 0
      %p222 = por %p220, %p221
      %s223 = ssub.s32 %s21, %s28
      %p224 = scmp.eq.s32.totalorder %s223, 0
      %s226 = sadd.s32 %s225, 1
      %s227 = scalar_select %p224, %s225, %s226
      %p230 = pneg %p224
      %p231 = scmp.eq.s32.totalorder %s21, 1
      %p232 = por %p230, %p231
      %p233 = scmp.ne.s32.totalorder %s225, %s228
      %p234 = scmp.eq.s32.totalorder %s21, 0
      %p235 = por %p233, %p234
      %p236 = scmp.ne.s32.totalorder %s225, %s228
      %p237 = scmp.eq.s32.totalorder %s26, 1
      %p238 = por %p236, %p237
      %p239 = scmp.ne.s32.totalorder %s228, %s229
      %p240 = scmp.eq.s32.totalorder %s26, 0
      %p241 = por %p239, %p240
      %p242 = scmp.ne.s32.totalorder %s228, %s229
      %p243 = scmp.eq.s32.totalorder %s27, 1
      %p244 = por %p242, %p243
      %p246 = scmp.ne.s32.totalorder %s229, %s245
      %p247 = scmp.eq.s32.totalorder %s27, 0
      %p248 = por %p246, %p247
      %p249 = scmp.le.s32.totalorder 1, %s21
      %p250 = scmp.lt.s32.totalorder %s21, 3
      %p251 = pnand %p249, %p250
      %p252 = pneg %p251
      // Predicated region
      $region9: #{autoencoder_forward_pallas.1} parent=5 // pred_check
        _
      $region10: #{autoencoder_forward_pallas.1} parent=5 // pred_check_branch
        %254 = sbr.rel (%p251) target = $region12
      $region11: #{autoencoder_forward_pallas.1} parent=5 // pred_region
        %s255 = ssub.s32 %s21, 1
        // Predicated region
        $region13: #{autoencoder_forward_pallas.1} parent=11 // pred_check
          %p256 = pneg %p68
        $region14: #{autoencoder_forward_pallas.1} parent=11 // pred_check_branch
          %258 = sbr.rel (%p256) target = $region16
        $region15: #{autoencoder_forward_pallas.1} parent=11 // pred_region
          %s260 = ssub.s32 16, 16
          %261 = vsyncadd [#allocation5], %s260
          %s263 = sshll.u32 %s1, 4
          %s264 = int_to_ptr.vmem [resolvable:$true] %s263
          %266 = dma.vmem_to_smem %s264, 16, [#allocation4], [#allocation5]
        $region16: #{autoencoder_forward_pallas.1} parent=11 // pred_fallthru
          _
        // Predicated region
        $region17: #{autoencoder_forward_pallas.1} parent=11 // pred_check
          %p267 = pneg %p89
        $region18: #{autoencoder_forward_pallas.1} parent=11 // pred_check_branch
          %269 = sbr.rel (%p267) target = $region20
        $region19: #{autoencoder_forward_pallas.1} parent=11 // pred_region
          _
        $region20: #{autoencoder_forward_pallas.1} parent=11 // pred_fallthru
          _
        // Predicated region
        $region21: #{autoencoder_forward_pallas.1} parent=11 // pred_check
          %p270 = pneg %p110
        $region22: #{autoencoder_forward_pallas.1} parent=11 // pred_check_branch
          %272 = sbr.rel (%p270) target = $region24
        $region23: #{autoencoder_forward_pallas.1} parent=11 // pred_region
          %s274 = ssub.s32 16, 16
          %275 = vsyncadd [#allocation7], %s274
          %s277 = sshll.u32 %s3, 4
          %s278 = int_to_ptr.vmem [resolvable:$true] %s277
          %280 = dma.vmem_to_smem %s278, 16, [#allocation6], [#allocation7]
        $region24: #{autoencoder_forward_pallas.1} parent=11 // pred_fallthru
          _
        // Predicated region
        $region25: #{autoencoder_forward_pallas.1} parent=11 // pred_check
          %p281 = pneg %p131
        $region26: #{autoencoder_forward_pallas.1} parent=11 // pred_check_branch
          %283 = sbr.rel (%p281) target = $region28
        $region27: #{autoencoder_forward_pallas.1} parent=11 // pred_region
          %s285 = ssub.s32 16, 16
          %286 = vsyncadd [#allocation7], %s285
          %s288 = sshll.u32 %s4, 4
          %s289 = int_to_ptr.vmem [resolvable:$true] %s288
          %291 = dma.vmem_to_smem %s289, 16, [#allocation8], [#allocation7]
        $region28: #{autoencoder_forward_pallas.1} parent=11 // pred_fallthru
          _
        // Predicated region
        $region29: #{autoencoder_forward_pallas.1} parent=11 // pred_check
          %p292 = pneg %p152
        $region30: #{autoencoder_forward_pallas.1} parent=11 // pred_check_branch
          %294 = sbr.rel (%p292) target = $region32
        $region31: #{autoencoder_forward_pallas.1} parent=11 // pred_region
          %s296 = ssub.s32 16, 16
          %297 = vsyncadd [#allocation10], %s296
          %s299 = sshll.u32 %s5, 4
          %s300 = int_to_ptr.vmem [resolvable:$true] %s299
          %302 = dma.vmem_to_smem %s300, 16, [#allocation9], [#allocation10]
        $region32: #{autoencoder_forward_pallas.1} parent=11 // pred_fallthru
          _
        // Predicated region
        $region33: #{autoencoder_forward_pallas.1} parent=11 // pred_check
          %p303 = pneg %p173
        $region34: #{autoencoder_forward_pallas.1} parent=11 // pred_check_branch
          %305 = sbr.rel (%p303) target = $region36
        $region35: #{autoencoder_forward_pallas.1} parent=11 // pred_region
          _
        $region36: #{autoencoder_forward_pallas.1} parent=11 // pred_fallthru
          _
        // Predicated region
        $region37: #{autoencoder_forward_pallas.1} parent=11 // pred_check
          %p306 = pneg %p194
        $region38: #{autoencoder_forward_pallas.1} parent=11 // pred_check_branch
          %308 = sbr.rel (%p306) target = $region40
        $region39: #{autoencoder_forward_pallas.1} parent=11 // pred_region
          %s310 = ssub.s32 16, 16
          %311 = vsyncadd [#allocation10], %s310
          %s313 = sshll.u32 %s7, 4
          %s314 = int_to_ptr.vmem [resolvable:$true] %s313
          %316 = dma.vmem_to_smem %s314, 16, [#allocation11], [#allocation10]
        $region40: #{autoencoder_forward_pallas.1} parent=11 // pred_fallthru
          _
        // Predicated region
        $region41: #{autoencoder_forward_pallas.1} parent=11 // pred_check
          %p317 = pneg %p215
        $region42: #{autoencoder_forward_pallas.1} parent=11 // pred_check_branch
          %319 = sbr.rel (%p317) target = $region44
        $region43: #{autoencoder_forward_pallas.1} parent=11 // pred_region
          %s321 = ssub.s32 16, 16
          %322 = vsyncadd [#allocation13], %s321
          %s324 = sshll.u32 %s8, 4
          %s325 = int_to_ptr.vmem [resolvable:$true] %s324
          %327 = dma.vmem_to_smem %s325, 16, [#allocation12], [#allocation13]
        $region44: #{autoencoder_forward_pallas.1} parent=11 // pred_fallthru
          _
      $region12: #{autoencoder_forward_pallas.1} parent=5 // pred_fallthru
        _
      %p328 = scmp.lt.s32.totalorder %s21, 2
      // Predicated region
      $region45: #{autoencoder_forward_pallas.1} parent=5 // pred_check
        %p329 = pneg %p328
      $region46: #{autoencoder_forward_pallas.1} parent=5 // pred_check_branch
        %331 = sbr.rel (%p329) target = $region48
      $region47: #{autoencoder_forward_pallas.1} parent=5 // pred_region
        // Predicated region
        $region49: #{autoencoder_forward_pallas.1} parent=47 // pred_check
          %p332 = pneg %p41
        $region50: #{autoencoder_forward_pallas.1} parent=47 // pred_check_branch
          %334 = sbr.rel (%p332) target = $region52
        $region51: #{autoencoder_forward_pallas.1} parent=47 // pred_region
          %p335 = scmp.lt.s32.totalorder %s21, 1
          %s336 = scalar_select %p335, %s21, 1
          %s337 = smul.addr %s336, 10
          %s338 = smul.addr %s337, 8
          %s339 = scalar_lea.vmem %s0, %s338
        $region52: #{autoencoder_forward_pallas.1} parent=47 // pred_fallthru
          _
      $region48: #{autoencoder_forward_pallas.1} parent=5 // pred_fallthru
        _
      %p340 = scmp.le.s32.totalorder 1, %s21
      %p341 = scmp.lt.s32.totalorder %s21, 3
      %p342 = pnand %p340, %p341
      %p343 = pneg %p342
      // Predicated region
      $region53: #{autoencoder_forward_pallas.1} parent=5 // pred_check
        _
      $region54: #{autoencoder_forward_pallas.1} parent=5 // pred_check_branch
        %345 = sbr.rel (%p342) target = $region56
      $region55: #{autoencoder_forward_pallas.1} parent=5 // pred_region
        %s346 = ssub.s32 %s21, 1
        // Predicated region
        $region57: #{autoencoder_forward_pallas.1} parent=55 // pred_check
          %p347 = pneg %p68
        $region58: #{autoencoder_forward_pallas.1} parent=55 // pred_check_branch
          %349 = sbr.rel (%p347) target = $region60
        $region59: #{autoencoder_forward_pallas.1} parent=55 // pred_region
          %350 = dma.done [#allocation5], 16
        $region60: #{autoencoder_forward_pallas.1} parent=55 // pred_fallthru
          _
        // Predicated region
        $region61: #{autoencoder_forward_pallas.1} parent=55 // pred_check
          %p351 = pneg %p110
        $region62: #{autoencoder_forward_pallas.1} parent=55 // pred_check_branch
          %353 = sbr.rel (%p351) target = $region64
        $region63: #{autoencoder_forward_pallas.1} parent=55 // pred_region
          %354 = dma.done [#allocation7], 16
        $region64: #{autoencoder_forward_pallas.1} parent=55 // pred_fallthru
          _
        // Predicated region
        $region65: #{autoencoder_forward_pallas.1} parent=55 // pred_check
          %p355 = pneg %p131
        $region66: #{autoencoder_forward_pallas.1} parent=55 // pred_check_branch
          %357 = sbr.rel (%p355) target = $region68
        $region67: #{autoencoder_forward_pallas.1} parent=55 // pred_region
          %358 = dma.done [#allocation7], 16
        $region68: #{autoencoder_forward_pallas.1} parent=55 // pred_fallthru
          _
        // Predicated region
        $region69: #{autoencoder_forward_pallas.1} parent=55 // pred_check
          %p359 = pneg %p152
        $region70: #{autoencoder_forward_pallas.1} parent=55 // pred_check_branch
          %361 = sbr.rel (%p359) target = $region72
        $region71: #{autoencoder_forward_pallas.1} parent=55 // pred_region
          %362 = dma.done [#allocation10], 16
        $region72: #{autoencoder_forward_pallas.1} parent=55 // pred_fallthru
          _
        // Predicated region
        $region73: #{autoencoder_forward_pallas.1} parent=55 // pred_check
          %p363 = pneg %p194
        $region74: #{autoencoder_forward_pallas.1} parent=55 // pred_check_branch
          %365 = sbr.rel (%p363) target = $region76
        $region75: #{autoencoder_forward_pallas.1} parent=55 // pred_region
          %366 = dma.done [#allocation10], 16
        $region76: #{autoencoder_forward_pallas.1} parent=55 // pred_fallthru
          _
        // Predicated region
        $region77: #{autoencoder_forward_pallas.1} parent=55 // pred_check
          %p367 = pneg %p215
        $region78: #{autoencoder_forward_pallas.1} parent=55 // pred_check_branch
          %369 = sbr.rel (%p367) target = $region80
        $region79: #{autoencoder_forward_pallas.1} parent=55 // pred_region
          %370 = dma.done [#allocation13], 16
        $region80: #{autoencoder_forward_pallas.1} parent=55 // pred_fallthru
          _
        %371 = sfence
        %p372 = scmp.lt.s32.totalorder %s26, 1
        %s373 = scalar_select %p372, %s26, 1
        %s374 = smul.addr %s373, 10
        %s375 = smul.addr %s374, 8
        %s376 = scalar_lea.vmem %s0, %s375
        %p377 = pneg %p47
        %p378 = pneg %p44
        %p379 = pneg %p68
        %p380 = pneg %p65
        %p381 = pneg %p89
        %p382 = pneg %p86
        %p383 = pneg %p110
        %p384 = pneg %p107
        %p385 = pneg %p131
        %p386 = pneg %p128
        %p387 = pneg %p152
        %p388 = pneg %p149
        %p389 = pneg %p173
        %p390 = pneg %p170
        %p391 = pneg %p194
        %p392 = pneg %p191
        %p393 = pneg %p215
        %p394 = pneg %p212
        %p395 = pneg %p241
        %p396 = pneg %p238
        %p397 = scmp.lt.s32.totalorder %s26, 1
        %s398 = scalar_select %p397, %s26, 1
        %s399 = smul.addr %s398, 10
        %s400 = smul.addr %s399, 8
        %s401 = scalar_lea.vmem %s9, %s400
        %p402 = scmp.lt.s32.totalorder %s26, 1
        %s403 = scalar_select %p402, %s26, 1
        %s404 = smul.addr %s403, 10
        %s405 = smul.addr %s404, 8
        %s406 = scalar_lea.vmem %s0, %s405
        %p407 = scmp.lt.s32.totalorder %s26, 1
        %s408 = scalar_select %p407, %s26, 1
        %s409 = smul.addr %s408, 10
        %s410 = smul.addr %s409, 8
        %s411 = scalar_lea.vmem %s9, %s410
        %v412 = vld [vmem:[%s406] sm:$0xff]
        %v413 = vld [vmem:[%s406 + $0x8] sm:$0xff]
        %s414 = scalar_lea.vmem %s406, 16
        %v415 = vld [vmem:[%s414] sm:$0xff]
        %v416 = vld [vmem:[%s414 + $0x8] sm:$0xff]
        %s417 = scalar_lea.vmem %s406, 32
        %v418 = vld [vmem:[%s417] sm:$0xff]
        %v419 = vld [vmem:[%s417 + $0x8] sm:$0xff]
        %s420 = scalar_lea.vmem %s406, 48
        %v421 = vld [vmem:[%s420] sm:$0xff]
        %v422 = vld [vmem:[%s420 + $0x8] sm:$0xff]
        %s423 = scalar_lea.vmem %s406, 64
        %v424 = vld [vmem:[%s423] sm:$0xff]
        %v425 = vld [vmem:[%s423 + $0x8] sm:$0xff]
        %s426 = sld [smem:[#allocation2]]
        %v427 = vstv %s426
        %s428 = sld [smem:[#allocation4]]
        %v429 = vstv %s428
        %v430 = vmul.f32 %v429, %v412
        %v431 = vmul.f32 %v429, %v413
        %v432 = vadd.f32 %v427, %v430
        %v433 = vadd.f32 %v427, %v431
        %434 = vrot.lane.b32.xlu0 %v412, 120
        %v435 = vpop.permute.xlu0 %434
        %436 = vrot.lane.b32.xlu0 %v413, 120
        %v437 = vpop.permute.xlu0 %436
        %s438 = sld [smem:[#allocation4 + $0x1]]
        %v439 = vstv %s438
        %v440 = vmul.f32 %v439, %v435
        %v441 = vmul.f32 %v439, %v437
        %v442 = vadd.f32 %v432, %v440
        %v443 = vadd.f32 %v433, %v441
        %444 = vrot.lane.b32.xlu0 %v412, 112
        %v445 = vpop.permute.xlu0 %444
        %446 = vrot.lane.b32.xlu0 %v413, 112
        %v447 = vpop.permute.xlu0 %446
        %s448 = sld [smem:[#allocation4 + $0x2]]
        %v449 = vstv %s448
        %v450 = vmul.f32 %v449, %v445
        %v451 = vmul.f32 %v449, %v447
        %v452 = vadd.f32 %v442, %v450
        %v453 = vadd.f32 %v443, %v451
        %v454 = vrot.slane %v412, 1
        %v455 = vrot.slane %v413, 1
        %v456 = vlaneseq
        %v457 = vshrl.u32 %v456, 7
        %vm458 = vcmp.lt.s32.totalorder %v457, 7
        %v459 = vsel %vm458, %v454, %v455
        %v460 = vsel %vm458, %v455, %v454
        %s461 = sld [smem:[#allocation4 + $0x3]]
        %v462 = vstv %s461
        %v463 = vmul.f32 %v462, %v459
        %v464 = vmul.f32 %v462, %v460
        %v465 = vadd.f32 %v452, %v463
        %v466 = vadd.f32 %v453, %v464
        %467 = vrot.lane.b32.xlu0 %v459, 120
        %v468 = vpop.permute.xlu0 %467
        %469 = vrot.lane.b32.xlu0 %v460, 120
        %v470 = vpop.permute.xlu0 %469
        %s471 = sld [smem:[#allocation4 + $0x4]]
        %v472 = vstv %s471
        %v473 = vmul.f32 %v472, %v468
        %v474 = vmul.f32 %v472, %v470
        %v475 = vadd.f32 %v465, %v473
        %v476 = vadd.f32 %v466, %v474
        %477 = vrot.lane.b32.xlu0 %v459, 112
        %v478 = vpop.permute.xlu0 %477
        %479 = vrot.lane.b32.xlu0 %v460, 112
        %v480 = vpop.permute.xlu0 %479
        %s481 = sld [smem:[#allocation4 + $0x5]]
        %v482 = vstv %s481
        %v483 = vmul.f32 %v482, %v478
        %v484 = vmul.f32 %v482, %v480
        %v485 = vadd.f32 %v475, %v483
        %v486 = vadd.f32 %v476, %v484
        %v487 = vrot.slane %v412, 2
        %v488 = vrot.slane %v413, 2
        %vm489 = vcmp.lt.s32.totalorder %v457, 6
        %v490 = vsel %vm489, %v487, %v488
        %v491 = vsel %vm489, %v488, %v487
        %s492 = sld [smem:[#allocation4 + $0x6]]
        %v493 = vstv %s492
        %v494 = vmul.f32 %v493, %v490
        %v495 = vmul.f32 %v493, %v491
        %v496 = vadd.f32 %v485, %v494
        %v497 = vadd.f32 %v486, %v495
        %498 = vrot.lane.b32.xlu0 %v490, 120
        %v499 = vpop.permute.xlu0 %498
        %500 = vrot.lane.b32.xlu0 %v491, 120
        %v501 = vpop.permute.xlu0 %500
        %s502 = sld [smem:[#allocation4 + $0x7]]
        %v503 = vstv %s502
        %v504 = vmul.f32 %v503, %v499
        %v505 = vmul.f32 %v503, %v501
        %v506 = vadd.f32 %v496, %v504
        %v507 = vadd.f32 %v497, %v505
        %508 = vrot.lane.b32.xlu0 %v490, 112
        %v509 = vpop.permute.xlu0 %508
        %510 = vrot.lane.b32.xlu0 %v491, 112
        %v511 = vpop.permute.xlu0 %510
        %s512 = sld [smem:[#allocation4 + $0x8]]
        %v513 = vstv %s512
        %v514 = vmul.f32 %v513, %v509
        %v515 = vmul.f32 %v513, %v511
        %v516 = vadd.f32 %v506, %v514
        %v517 = vadd.f32 %v507, %v515
        %s518 = sld [smem:[#allocation4 + $0x9]]
        %v519 = vstv %s518
        %v520 = vmul.f32 %v519, %v415
        %v521 = vmul.f32 %v519, %v416
        %v522 = vadd.f32 %v516, %v520
        %v523 = vadd.f32 %v517, %v521
        %524 = vrot.lane.b32.xlu0 %v415, 120
        %v525 = vpop.permute.xlu0 %524
        %526 = vrot.lane.b32.xlu0 %v416, 120
        %v527 = vpop.permute.xlu0 %526
        %s528 = sld [smem:[#allocation4 + $0xa]]
        %v529 = vstv %s528
        %v530 = vmul.f32 %v529, %v525
        %v531 = vmul.f32 %v529, %v527
        %v532 = vadd.f32 %v522, %v530
        %v533 = vadd.f32 %v523, %v531
        %534 = vrot.lane.b32.xlu0 %v415, 112
        %v535 = vpop.permute.xlu0 %534
        %536 = vrot.lane.b32.xlu0 %v416, 112
        %v537 = vpop.permute.xlu0 %536
        %s538 = sld [smem:[#allocation4 + $0xb]]
        %v539 = vstv %s538
        %v540 = vmul.f32 %v539, %v535
        %v541 = vmul.f32 %v539, %v537
        %v542 = vadd.f32 %v532, %v540
        %v543 = vadd.f32 %v533, %v541
        %v544 = vrot.slane %v415, 1
        %v545 = vrot.slane %v416, 1
        %v546 = vsel %vm458, %v544, %v545
        %v547 = vsel %vm458, %v545, %v544
        %s548 = sld [smem:[#allocation4 + $0xc]]
        %v549 = vstv %s548
        %v550 = vmul.f32 %v549, %v546
        %v551 = vmul.f32 %v549, %v547
        %v552 = vadd.f32 %v542, %v550
        %v553 = vadd.f32 %v543, %v551
        %554 = vrot.lane.b32.xlu0 %v546, 120
        %v555 = vpop.permute.xlu0 %554
        %556 = vrot.lane.b32.xlu0 %v547, 120
        %v557 = vpop.permute.xlu0 %556
        %s558 = sld [smem:[#allocation4 + $0xd]]
        %v559 = vstv %s558
        %v560 = vmul.f32 %v559, %v555
        %v561 = vmul.f32 %v559, %v557
        %v562 = vadd.f32 %v552, %v560
        %v563 = vadd.f32 %v553, %v561
        %564 = vrot.lane.b32.xlu0 %v546, 112
        %v565 = vpop.permute.xlu0 %564
        %566 = vrot.lane.b32.xlu0 %v547, 112
        %v567 = vpop.permute.xlu0 %566
        %s568 = sld [smem:[#allocation4 + $0xe]]
        %v569 = vstv %s568
        %v570 = vmul.f32 %v569, %v565
        %v571 = vmul.f32 %v569, %v567
        %v572 = vadd.f32 %v562, %v570
        %v573 = vadd.f32 %v563, %v571
        %v574 = vrot.slane %v415, 2
        %v575 = vrot.slane %v416, 2
        %v576 = vsel %vm489, %v574, %v575
        %v577 = vsel %vm489, %v575, %v574
        %s578 = sld [smem:[#allocation4 + $0xf]]
        %v579 = vstv %s578
        %v580 = vmul.f32 %v579, %v576
        %v581 = vmul.f32 %v579, %v577
        %v582 = vadd.f32 %v572, %v580
        %v583 = vadd.f32 %v573, %v581
        %584 = vrot.lane.b32.xlu0 %v576, 120
        %v585 = vpop.permute.xlu0 %584
        %586 = vrot.lane.b32.xlu0 %v577, 120
        %v587 = vpop.permute.xlu0 %586
        %s588 = sld [smem:[#allocation4 + $0x10]]
        %v589 = vstv %s588
        %v590 = vmul.f32 %v589, %v585
        %v591 = vmul.f32 %v589, %v587
        %v592 = vadd.f32 %v582, %v590
        %v593 = vadd.f32 %v583, %v591
        %594 = vrot.lane.b32.xlu0 %v576, 112
        %v595 = vpop.permute.xlu0 %594
        %596 = vrot.lane.b32.xlu0 %v577, 112
        %v597 = vpop.permute.xlu0 %596
        %s598 = sld [smem:[#allocation4 + $0x11]]
        %v599 = vstv %s598
        %v600 = vmul.f32 %v599, %v595
        %v601 = vmul.f32 %v599, %v597
        %v602 = vadd.f32 %v592, %v600
        %v603 = vadd.f32 %v593, %v601
        %s604 = sld [smem:[#allocation4 + $0x12]]
        %v605 = vstv %s604
        %v606 = vmul.f32 %v605, %v418
        %v607 = vmul.f32 %v605, %v419
        %v608 = vadd.f32 %v602, %v606
        %v609 = vadd.f32 %v603, %v607
        %610 = vrot.lane.b32.xlu0 %v418, 120
        %v611 = vpop.permute.xlu0 %610
        %612 = vrot.lane.b32.xlu0 %v419, 120
        %v613 = vpop.permute.xlu0 %612
        %s614 = sld [smem:[#allocation4 + $0x13]]
        %v615 = vstv %s614
        %v616 = vmul.f32 %v615, %v611
        %v617 = vmul.f32 %v615, %v613
        %v618 = vadd.f32 %v608, %v616
        %v619 = vadd.f32 %v609, %v617
        %620 = vrot.lane.b32.xlu0 %v418, 112
        %v621 = vpop.permute.xlu0 %620
        %622 = vrot.lane.b32.xlu0 %v419, 112
        %v623 = vpop.permute.xlu0 %622
        %s624 = sld [smem:[#allocation4 + $0x14]]
        %v625 = vstv %s624
        %v626 = vmul.f32 %v625, %v621
        %v627 = vmul.f32 %v625, %v623
        %v628 = vadd.f32 %v618, %v626
        %v629 = vadd.f32 %v619, %v627
        %v630 = vrot.slane %v418, 1
        %v631 = vrot.slane %v419, 1
        %v632 = vsel %vm458, %v630, %v631
        %v633 = vsel %vm458, %v631, %v630
        %s634 = sld [smem:[#allocation4 + $0x15]]
        %v635 = vstv %s634
        %v636 = vmul.f32 %v635, %v632
        %v637 = vmul.f32 %v635, %v633
        %v638 = vadd.f32 %v628, %v636
        %v639 = vadd.f32 %v629, %v637
        %640 = vrot.lane.b32.xlu0 %v632, 120
        %v641 = vpop.permute.xlu0 %640
        %642 = vrot.lane.b32.xlu0 %v633, 120
        %v643 = vpop.permute.xlu0 %642
        %s644 = sld [smem:[#allocation4 + $0x16]]
        %v645 = vstv %s644
        %v646 = vmul.f32 %v645, %v641
        %v647 = vmul.f32 %v645, %v643
        %v648 = vadd.f32 %v638, %v646
        %v649 = vadd.f32 %v639, %v647
        %650 = vrot.lane.b32.xlu0 %v632, 112
        %v651 = vpop.permute.xlu0 %650
        %652 = vrot.lane.b32.xlu0 %v633, 112
        %v653 = vpop.permute.xlu0 %652
        %s654 = sld [smem:[#allocation4 + $0x17]]
        %v655 = vstv %s654
        %v656 = vmul.f32 %v655, %v651
        %v657 = vmul.f32 %v655, %v653
        %v658 = vadd.f32 %v648, %v656
        %v659 = vadd.f32 %v649, %v657
        %v660 = vrot.slane %v418, 2
        %v661 = vrot.slane %v419, 2
        %v662 = vsel %vm489, %v660, %v661
        %v663 = vsel %vm489, %v661, %v660
        %s664 = sld [smem:[#allocation4 + $0x18]]
        %v665 = vstv %s664
        %v666 = vmul.f32 %v665, %v662
        %v667 = vmul.f32 %v665, %v663
        %v668 = vadd.f32 %v658, %v666
        %v669 = vadd.f32 %v659, %v667
        %670 = vrot.lane.b32.xlu0 %v662, 120
        %v671 = vpop.permute.xlu0 %670
        %672 = vrot.lane.b32.xlu0 %v663, 120
        %v673 = vpop.permute.xlu0 %672
        %s674 = sld [smem:[#allocation4 + $0x19]]
        %v675 = vstv %s674
        %v676 = vmul.f32 %v675, %v671
        %v677 = vmul.f32 %v675, %v673
        %v678 = vadd.f32 %v668, %v676
        %v679 = vadd.f32 %v669, %v677
        %680 = vrot.lane.b32.xlu0 %v662, 112
        %v681 = vpop.permute.xlu0 %680
        %682 = vrot.lane.b32.xlu0 %v663, 112
        %v683 = vpop.permute.xlu0 %682
        %s684 = sld [smem:[#allocation4 + $0x1a]]
        %v685 = vstv %s684
        %v686 = vmul.f32 %v685, %v681
        %v687 = vmul.f32 %v685, %v683
        %v688 = vadd.f32 %v678, %v686
        %v689 = vadd.f32 %v679, %v687
        %s690 = sld [smem:[#allocation4 + $0x1b]]
        %v691 = vstv %s690
        %v692 = vmul.f32 %v691, %v421
        %v693 = vmul.f32 %v691, %v422
        %v694 = vadd.f32 %v688, %v692
        %v695 = vadd.f32 %v689, %v693
        %696 = vrot.lane.b32.xlu0 %v421, 120
        %v697 = vpop.permute.xlu0 %696
        %698 = vrot.lane.b32.xlu0 %v422, 120
        %v699 = vpop.permute.xlu0 %698
        %s700 = sld [smem:[#allocation4 + $0x1c]]
        %v701 = vstv %s700
        %v702 = vmul.f32 %v701, %v697
        %v703 = vmul.f32 %v701, %v699
        %v704 = vadd.f32 %v694, %v702
        %v705 = vadd.f32 %v695, %v703
        %706 = vrot.lane.b32.xlu0 %v421, 112
        %v707 = vpop.permute.xlu0 %706
        %708 = vrot.lane.b32.xlu0 %v422, 112
        %v709 = vpop.permute.xlu0 %708
        %s710 = sld [smem:[#allocation4 + $0x1d]]
        %v711 = vstv %s710
        %v712 = vmul.f32 %v711, %v707
        %v713 = vmul.f32 %v711, %v709
        %v714 = vadd.f32 %v704, %v712
        %v715 = vadd.f32 %v705, %v713
        %v716 = vrot.slane %v421, 1
        %v717 = vrot.slane %v422, 1
        %v718 = vsel %vm458, %v716, %v717
        %v719 = vsel %vm458, %v717, %v716
        %s720 = sld [smem:[#allocation4 + $0x1e]]
        %v721 = vstv %s720
        %v722 = vmul.f32 %v721, %v718
        %v723 = vmul.f32 %v721, %v719
        %v724 = vadd.f32 %v714, %v722
        %v725 = vadd.f32 %v715, %v723
        %726 = vrot.lane.b32.xlu0 %v718, 120
        %v727 = vpop.permute.xlu0 %726
        %728 = vrot.lane.b32.xlu0 %v719, 120
        %v729 = vpop.permute.xlu0 %728
        %s730 = sld [smem:[#allocation4 + $0x1f]]
        %v731 = vstv %s730
        %v732 = vmul.f32 %v731, %v727
        %v733 = vmul.f32 %v731, %v729
        %v734 = vadd.f32 %v724, %v732
        %v735 = vadd.f32 %v725, %v733
        %736 = vrot.lane.b32.xlu0 %v718, 112
        %v737 = vpop.permute.xlu0 %736
        %738 = vrot.lane.b32.xlu0 %v719, 112
        %v739 = vpop.permute.xlu0 %738
        %s740 = sld [smem:[#allocation4 + $0x20]]
        %v741 = vstv %s740
        %v742 = vmul.f32 %v741, %v737
        %v743 = vmul.f32 %v741, %v739
        %v744 = vadd.f32 %v734, %v742
        %v745 = vadd.f32 %v735, %v743
        %v746 = vrot.slane %v421, 2
        %v747 = vrot.slane %v422, 2
        %v748 = vsel %vm489, %v746, %v747
        %v749 = vsel %vm489, %v747, %v746
        %s750 = sld [smem:[#allocation4 + $0x21]]
        %v751 = vstv %s750
        %v752 = vmul.f32 %v751, %v748
        %v753 = vmul.f32 %v751, %v749
        %v754 = vadd.f32 %v744, %v752
        %v755 = vadd.f32 %v745, %v753
        %756 = vrot.lane.b32.xlu0 %v748, 120
        %v757 = vpop.permute.xlu0 %756
        %758 = vrot.lane.b32.xlu0 %v749, 120
        %v759 = vpop.permute.xlu0 %758
        %s760 = sld [smem:[#allocation4 + $0x22]]
        %v761 = vstv %s760
        %v762 = vmul.f32 %v761, %v757
        %v763 = vmul.f32 %v761, %v759
        %v764 = vadd.f32 %v754, %v762
        %v765 = vadd.f32 %v755, %v763
        %766 = vrot.lane.b32.xlu0 %v748, 112
        %v767 = vpop.permute.xlu0 %766
        %768 = vrot.lane.b32.xlu0 %v749, 112
        %v769 = vpop.permute.xlu0 %768
        %s770 = sld [smem:[#allocation4 + $0x23]]
        %v771 = vstv %s770
        %v772 = vmul.f32 %v771, %v767
        %v773 = vmul.f32 %v771, %v769
        %v774 = vadd.f32 %v764, %v772
        %v775 = vadd.f32 %v765, %v773
        %s776 = sld [smem:[#allocation4 + $0x24]]
        %v777 = vstv %s776
        %v778 = vmul.f32 %v777, %v424
        %v779 = vmul.f32 %v777, %v425
        %v780 = vadd.f32 %v774, %v778
        %v781 = vadd.f32 %v775, %v779
        %782 = vrot.lane.b32.xlu0 %v424, 120
        %v783 = vpop.permute.xlu0 %782
        %784 = vrot.lane.b32.xlu0 %v425, 120
        %v785 = vpop.permute.xlu0 %784
        %s786 = sld [smem:[#allocation4 + $0x25]]
        %v787 = vstv %s786
        %v788 = vmul.f32 %v787, %v783
        %v789 = vmul.f32 %v787, %v785
        %v790 = vadd.f32 %v780, %v788
        %v791 = vadd.f32 %v781, %v789
        %792 = vrot.lane.b32.xlu0 %v424, 112
        %v793 = vpop.permute.xlu0 %792
        %794 = vrot.lane.b32.xlu0 %v425, 112
        %v795 = vpop.permute.xlu0 %794
        %s796 = sld [smem:[#allocation4 + $0x26]]
        %v797 = vstv %s796
        %v798 = vmul.f32 %v797, %v793
        %v799 = vmul.f32 %v797, %v795
        %v800 = vadd.f32 %v790, %v798
        %v801 = vadd.f32 %v791, %v799
        %v802 = vrot.slane %v424, 1
        %v803 = vrot.slane %v425, 1
        %v804 = vsel %vm458, %v802, %v803
        %v805 = vsel %vm458, %v803, %v802
        %s806 = sld [smem:[#allocation4 + $0x27]]
        %v807 = vstv %s806
        %v808 = vmul.f32 %v807, %v804
        %v809 = vmul.f32 %v807, %v805
        %v810 = vadd.f32 %v800, %v808
        %v811 = vadd.f32 %v801, %v809
        %812 = vrot.lane.b32.xlu0 %v804, 120
        %v813 = vpop.permute.xlu0 %812
        %814 = vrot.lane.b32.xlu0 %v805, 120
        %v815 = vpop.permute.xlu0 %814
        %s816 = sld [smem:[#allocation4 + $0x28]]
        %v817 = vstv %s816
        %v818 = vmul.f32 %v817, %v813
        %v819 = vmul.f32 %v817, %v815
        %v820 = vadd.f32 %v810, %v818
        %v821 = vadd.f32 %v811, %v819
        %822 = vrot.lane.b32.xlu0 %v804, 112
        %v823 = vpop.permute.xlu0 %822
        %824 = vrot.lane.b32.xlu0 %v805, 112
        %v825 = vpop.permute.xlu0 %824
        %s826 = sld [smem:[#allocation4 + $0x29]]
        %v827 = vstv %s826
        %v828 = vmul.f32 %v827, %v823
        %v829 = vmul.f32 %v827, %v825
        %v830 = vadd.f32 %v820, %v828
        %v831 = vadd.f32 %v821, %v829
        %v832 = vrot.slane %v424, 2
        %v833 = vrot.slane %v425, 2
        %v834 = vsel %vm489, %v832, %v833
        %v835 = vsel %vm489, %v833, %v832
        %s836 = sld [smem:[#allocation4 + $0x2a]]
        %v837 = vstv %s836
        %v838 = vmul.f32 %v837, %v834
        %v839 = vmul.f32 %v837, %v835
        %v840 = vadd.f32 %v830, %v838
        %v841 = vadd.f32 %v831, %v839
        %842 = vrot.lane.b32.xlu0 %v834, 120
        %v843 = vpop.permute.xlu0 %842
        %844 = vrot.lane.b32.xlu0 %v835, 120
        %v845 = vpop.permute.xlu0 %844
        %s846 = sld [smem:[#allocation4 + $0x2b]]
        %v847 = vstv %s846
        %v848 = vmul.f32 %v847, %v843
        %v849 = vmul.f32 %v847, %v845
        %v850 = vadd.f32 %v840, %v848
        %v851 = vadd.f32 %v841, %v849
        %852 = vrot.lane.b32.xlu0 %v834, 112
        %v853 = vpop.permute.xlu0 %852
        %854 = vrot.lane.b32.xlu0 %v835, 112
        %v855 = vpop.permute.xlu0 %854
        %s856 = sld [smem:[#allocation4 + $0x2c]]
        %v857 = vstv %s856
        %v858 = vmul.f32 %v857, %v853
        %v859 = vmul.f32 %v857, %v855
        %v860 = vadd.f32 %v850, %v858
        %v861 = vadd.f32 %v851, %v859
        %v862 = vtanh.pop %v860
        %v863 = vtanh.pop %v861
        %v864 = vmul.f32 %v862, 0.5
        %v865 = vmul.f32 %v863, 0.5
        %v866 = vadd.f32 %v864, 0.5
        %v867 = vadd.f32 %v865, 0.5
        %s868 = sld [smem:[#allocation8]]
        %v869 = vstv %s868
        %s870 = sld [smem:[#allocation8 + $0x1]]
        %v871 = vstv %s870
        %s872 = sld [smem:[#allocation6]]
        %v873 = vstv %s872
        %v874 = vmul.f32 %v873, %v866
        %v875 = vmul.f32 %v873, %v867
        %v876 = vadd.f32 %v869, %v874
        %v877 = vadd.f32 %v869, %v875
        %s878 = sld [smem:[#allocation6 + $0x9]]
        %v879 = vstv %s878
        %v880 = vmul.f32 %v879, %v866
        %v881 = vmul.f32 %v879, %v867
        %v882 = vadd.f32 %v871, %v880
        %v883 = vadd.f32 %v871, %v881
        %884 = vrot.lane.b32.xlu0 %v866, 120
        %v885 = vpop.permute.xlu0 %884
        %886 = vrot.lane.b32.xlu0 %v867, 120
        %v887 = vpop.permute.xlu0 %886
        %s888 = sld [smem:[#allocation6 + $0x1]]
        %v889 = vstv %s888
        %v890 = vmul.f32 %v889, %v885
        %v891 = vmul.f32 %v889, %v887
        %v892 = vadd.f32 %v876, %v890
        %v893 = vadd.f32 %v877, %v891
        %s894 = sld [smem:[#allocation6 + $0xa]]
        %v895 = vstv %s894
        %v896 = vmul.f32 %v895, %v885
        %v897 = vmul.f32 %v895, %v887
        %v898 = vadd.f32 %v882, %v896
        %v899 = vadd.f32 %v883, %v897
        %900 = vrot.lane.b32.xlu0 %v866, 112
        %v901 = vpop.permute.xlu0 %900
        %902 = vrot.lane.b32.xlu0 %v867, 112
        %v903 = vpop.permute.xlu0 %902
        %s904 = sld [smem:[#allocation6 + $0x2]]
        %v905 = vstv %s904
        %v906 = vmul.f32 %v905, %v901
        %v907 = vmul.f32 %v905, %v903
        %v908 = vadd.f32 %v892, %v906
        %v909 = vadd.f32 %v893, %v907
        %s910 = sld [smem:[#allocation6 + $0xb]]
        %v911 = vstv %s910
        %v912 = vmul.f32 %v911, %v901
        %v913 = vmul.f32 %v911, %v903
        %v914 = vadd.f32 %v898, %v912
        %v915 = vadd.f32 %v899, %v913
        %v916 = vrot.slane %v866, 1
        %v917 = vrot.slane %v867, 1
        %v918 = vsel %vm458, %v916, %v917
        %v919 = vsel %vm458, %v917, %v916
        %s920 = sld [smem:[#allocation6 + $0x3]]
        %v921 = vstv %s920
        %v922 = vmul.f32 %v921, %v918
        %v923 = vmul.f32 %v921, %v919
        %v924 = vadd.f32 %v908, %v922
        %v925 = vadd.f32 %v909, %v923
        %s926 = sld [smem:[#allocation6 + $0xc]]
        %v927 = vstv %s926
        %v928 = vmul.f32 %v927, %v918
        %v929 = vmul.f32 %v927, %v919
        %v930 = vadd.f32 %v914, %v928
        %v931 = vadd.f32 %v915, %v929
        %932 = vrot.lane.b32.xlu0 %v918, 120
        %v933 = vpop.permute.xlu0 %932
        %934 = vrot.lane.b32.xlu0 %v919, 120
        %v935 = vpop.permute.xlu0 %934
        %s936 = sld [smem:[#allocation6 + $0x4]]
        %v937 = vstv %s936
        %v938 = vmul.f32 %v937, %v933
        %v939 = vmul.f32 %v937, %v935
        %v940 = vadd.f32 %v924, %v938
        %v941 = vadd.f32 %v925, %v939
        %s942 = sld [smem:[#allocation6 + $0xd]]
        %v943 = vstv %s942
        %v944 = vmul.f32 %v943, %v933
        %v945 = vmul.f32 %v943, %v935
        %v946 = vadd.f32 %v930, %v944
        %v947 = vadd.f32 %v931, %v945
        %948 = vrot.lane.b32.xlu0 %v918, 112
        %v949 = vpop.permute.xlu0 %948
        %950 = vrot.lane.b32.xlu0 %v919, 112
        %v951 = vpop.permute.xlu0 %950
        %s952 = sld [smem:[#allocation6 + $0x5]]
        %v953 = vstv %s952
        %v954 = vmul.f32 %v953, %v949
        %v955 = vmul.f32 %v953, %v951
        %v956 = vadd.f32 %v940, %v954
        %v957 = vadd.f32 %v941, %v955
        %s958 = sld [smem:[#allocation6 + $0xe]]
        %v959 = vstv %s958
        %v960 = vmul.f32 %v959, %v949
        %v961 = vmul.f32 %v959, %v951
        %v962 = vadd.f32 %v946, %v960
        %v963 = vadd.f32 %v947, %v961
        %v964 = vrot.slane %v866, 2
        %v965 = vrot.slane %v867, 2
        %v966 = vsel %vm489, %v964, %v965
        %v967 = vsel %vm489, %v965, %v964
        %s968 = sld [smem:[#allocation6 + $0x6]]
        %v969 = vstv %s968
        %v970 = vmul.f32 %v969, %v966
        %v971 = vmul.f32 %v969, %v967
        %v972 = vadd.f32 %v956, %v970
        %v973 = vadd.f32 %v957, %v971
        %s974 = sld [smem:[#allocation6 + $0xf]]
        %v975 = vstv %s974
        %v976 = vmul.f32 %v975, %v966
        %v977 = vmul.f32 %v975, %v967
        %v978 = vadd.f32 %v962, %v976
        %v979 = vadd.f32 %v963, %v977
        %980 = vrot.lane.b32.xlu0 %v966, 120
        %v981 = vpop.permute.xlu0 %980
        %982 = vrot.lane.b32.xlu0 %v967, 120
        %v983 = vpop.permute.xlu0 %982
        %s984 = sld [smem:[#allocation6 + $0x7]]
        %v985 = vstv %s984
        %v986 = vmul.f32 %v985, %v981
        %v987 = vmul.f32 %v985, %v983
        %v988 = vadd.f32 %v972, %v986
        %v989 = vadd.f32 %v973, %v987
        %s990 = sld [smem:[#allocation6 + $0x10]]
        %v991 = vstv %s990
        %v992 = vmul.f32 %v991, %v981
        %v993 = vmul.f32 %v991, %v983
        %v994 = vadd.f32 %v978, %v992
        %v995 = vadd.f32 %v979, %v993
        %996 = vrot.lane.b32.xlu0 %v966, 112
        %v997 = vpop.permute.xlu0 %996
        %998 = vrot.lane.b32.xlu0 %v967, 112
        %v999 = vpop.permute.xlu0 %998
        %s1000 = sld [smem:[#allocation6 + $0x8]]
        %v1001 = vstv %s1000
        %v1002 = vmul.f32 %v1001, %v997
        %v1003 = vmul.f32 %v1001, %v999
        %v1004 = vadd.f32 %v988, %v1002
        %v1005 = vadd.f32 %v989, %v1003
        %s1006 = sld [smem:[#allocation6 + $0x11]]
        %v1007 = vstv %s1006
        %v1008 = vmul.f32 %v1007, %v997
        %v1009 = vmul.f32 %v1007, %v999
        %v1010 = vadd.f32 %v994, %v1008
        %v1011 = vadd.f32 %v995, %v1009
        %v1012 = vtanh.pop %v1004
        %v1013 = vtanh.pop %v1005
        %v1014 = vmul.f32 %v1012, 0.5
        %v1015 = vmul.f32 %v1013, 0.5
        %v1016 = vadd.f32 %v1014, 0.5
        %v1017 = vadd.f32 %v1015, 0.5
        %v1018 = vtanh.pop %v1010
        %v1019 = vtanh.pop %v1011
        %v1020 = vmul.f32 %v1018, 0.5
        %v1021 = vmul.f32 %v1019, 0.5
        %v1022 = vadd.f32 %v1020, 0.5
        %v1023 = vadd.f32 %v1021, 0.5
        %v1024 = vadd.s32 %v457, 8
        %v1025 = vlaneseq
        %v1026 = vand.u32 %v1025, 127
        %vm1027 = vcmp.lt.s32.totalorder %v457, 12
        %vm1028 = vcmp.lt.s32.totalorder %v1024, 12
        %vm1029 = vcmp.lt.s32.totalorder %v1026, 96
        %vm1030 = vmand %vm1027, %vm1029
        %vm1031 = vmand %vm1028, %vm1029
        %v1032 = vsel %vm1030, %v1016, 0.0
        %v1033 = vsel %vm1031, %v1017, 0.0
        %v1034 = vsel %vm1030, %v1022, 0.0
        %v1035 = vsel %vm1031, %v1023, 0.0
        %s1036 = sld [smem:[#allocation3]]
        %v1037 = vstv %s1036
        %v1038 = vrot.slane %v1032, 6
        %v1039 = vrot.slane %v1033, 6
        %vm1040 = vcmp.lt.s32.totalorder %v457, 2
        %v1041 = vsel %vm1040, %v1038, %v1039
        %v1042 = vsel %vm1040, %v1039, %v1038
        %1043 = vrot.lane.b32.xlu0 %v1042, 16
        %v1044 = vpop.permute.xlu0 %1043
        %1045 = vrot.lane.b32.xlu0 %v1041, 16
        %v1046 = vpop.permute.xlu0 %1045
        %s1047 = sld [smem:[#allocation9]]
        %v1048 = vstv %s1047
        %v1049 = vmul.f32 %v1048, %v1044
        %v1050 = vmul.f32 %v1048, %v1046
        %v1051 = vadd.f32 %v1037, %v1049
        %v1052 = vadd.f32 %v1037, %v1050
        %1053 = vrot.lane.b32.xlu0 %v1042, 8
        %v1054 = vpop.permute.xlu0 %1053
        %1055 = vrot.lane.b32.xlu0 %v1041, 8
        %v1056 = vpop.permute.xlu0 %1055
        %s1057 = sld [smem:[#allocation9 + $0x1]]
        %v1058 = vstv %s1057
        %v1059 = vmul.f32 %v1058, %v1054
        %v1060 = vmul.f32 %v1058, %v1056
        %v1061 = vadd.f32 %v1051, %v1059
        %v1062 = vadd.f32 %v1052, %v1060
        %s1063 = sld [smem:[#allocation9 + $0x2]]
        %v1064 = vstv %s1063
        %v1065 = vmul.f32 %v1064, %v1042
        %v1066 = vmul.f32 %v1064, %v1041
        %v1067 = vadd.f32 %v1061, %v1065
        %v1068 = vadd.f32 %v1062, %v1066
        %v1069 = vrot.slane %v1032, 7
        %v1070 = vrot.slane %v1033, 7
        %vm1071 = vcmp.lt.s32.totalorder %v457, 1
        %v1072 = vsel %vm1071, %v1069, %v1070
        %v1073 = vsel %vm1071, %v1070, %v1069
        %1074 = vrot.lane.b32.xlu0 %v1073, 16
        %v1075 = vpop.permute.xlu0 %1074
        %1076 = vrot.lane.b32.xlu0 %v1072, 16
        %v1077 = vpop.permute.xlu0 %1076
        %s1078 = sld [smem:[#allocation9 + $0x3]]
        %v1079 = vstv %s1078
        %v1080 = vmul.f32 %v1079, %v1075
        %v1081 = vmul.f32 %v1079, %v1077
        %v1082 = vadd.f32 %v1067, %v1080
        %v1083 = vadd.f32 %v1068, %v1081
        %1084 = vrot.lane.b32.xlu0 %v1073, 8
        %v1085 = vpop.permute.xlu0 %1084
        %1086 = vrot.lane.b32.xlu0 %v1072, 8
        %v1087 = vpop.permute.xlu0 %1086
        %s1088 = sld [smem:[#allocation9 + $0x4]]
        %v1089 = vstv %s1088
        %v1090 = vmul.f32 %v1089, %v1085
        %v1091 = vmul.f32 %v1089, %v1087
        %v1092 = vadd.f32 %v1082, %v1090
        %v1093 = vadd.f32 %v1083, %v1091
        %s1094 = sld [smem:[#allocation9 + $0x5]]
        %v1095 = vstv %s1094
        %v1096 = vmul.f32 %v1095, %v1073
        %v1097 = vmul.f32 %v1095, %v1072
        %v1098 = vadd.f32 %v1092, %v1096
        %v1099 = vadd.f32 %v1093, %v1097
        %1100 = vrot.lane.b32.xlu0 %v1032, 16
        %v1101 = vpop.permute.xlu0 %1100
        %1102 = vrot.lane.b32.xlu0 %v1033, 16
        %v1103 = vpop.permute.xlu0 %1102
        %s1104 = sld [smem:[#allocation9 + $0x6]]
        %v1105 = vstv %s1104
        %v1106 = vmul.f32 %v1105, %v1101
        %v1107 = vmul.f32 %v1105, %v1103
        %v1108 = vadd.f32 %v1098, %v1106
        %v1109 = vadd.f32 %v1099, %v1107
        %1110 = vrot.lane.b32.xlu0 %v1032, 8
        %v1111 = vpop.permute.xlu0 %1110
        %1112 = vrot.lane.b32.xlu0 %v1033, 8
        %v1113 = vpop.permute.xlu0 %1112
        %s1114 = sld [smem:[#allocation9 + $0x7]]
        %v1115 = vstv %s1114
        %v1116 = vmul.f32 %v1115, %v1111
        %v1117 = vmul.f32 %v1115, %v1113
        %v1118 = vadd.f32 %v1108, %v1116
        %v1119 = vadd.f32 %v1109, %v1117
        %s1120 = sld [smem:[#allocation9 + $0x8]]
        %v1121 = vstv %s1120
        %v1122 = vmul.f32 %v1121, %v1032
        %v1123 = vmul.f32 %v1121, %v1033
        %v1124 = vadd.f32 %v1118, %v1122
        %v1125 = vadd.f32 %v1119, %v1123
        %v1126 = vrot.slane %v1034, 6
        %v1127 = vrot.slane %v1035, 6
        %v1128 = vsel %vm1040, %v1126, %v1127
        %v1129 = vsel %vm1040, %v1127, %v1126
        %1130 = vrot.lane.b32.xlu0 %v1129, 16
        %v1131 = vpop.permute.xlu0 %1130
        %1132 = vrot.lane.b32.xlu0 %v1128, 16
        %v1133 = vpop.permute.xlu0 %1132
        %s1134 = sld [smem:[#allocation9 + $0x9]]
        %v1135 = vstv %s1134
        %v1136 = vmul.f32 %v1135, %v1131
        %v1137 = vmul.f32 %v1135, %v1133
        %v1138 = vadd.f32 %v1124, %v1136
        %v1139 = vadd.f32 %v1125, %v1137
        %1140 = vrot.lane.b32.xlu0 %v1129, 8
        %v1141 = vpop.permute.xlu0 %1140
        %1142 = vrot.lane.b32.xlu0 %v1128, 8
        %v1143 = vpop.permute.xlu0 %1142
        %s1144 = sld [smem:[#allocation9 + $0xa]]
        %v1145 = vstv %s1144
        %v1146 = vmul.f32 %v1145, %v1141
        %v1147 = vmul.f32 %v1145, %v1143
        %v1148 = vadd.f32 %v1138, %v1146
        %v1149 = vadd.f32 %v1139, %v1147
        %s1150 = sld [smem:[#allocation9 + $0xb]]
        %v1151 = vstv %s1150
        %v1152 = vmul.f32 %v1151, %v1129
        %v1153 = vmul.f32 %v1151, %v1128
        %v1154 = vadd.f32 %v1148, %v1152
        %v1155 = vadd.f32 %v1149, %v1153
        %v1156 = vrot.slane %v1034, 7
        %v1157 = vrot.slane %v1035, 7
        %v1158 = vsel %vm1071, %v1156, %v1157
        %v1159 = vsel %vm1071, %v1157, %v1156
        %1160 = vrot.lane.b32.xlu0 %v1159, 16
        %v1161 = vpop.permute.xlu0 %1160
        %1162 = vrot.lane.b32.xlu0 %v1158, 16
        %v1163 = vpop.permute.xlu0 %1162
        %s1164 = sld [smem:[#allocation9 + $0xc]]
        %v1165 = vstv %s1164
        %v1166 = vmul.f32 %v1165, %v1161
        %v1167 = vmul.f32 %v1165, %v1163
        %v1168 = vadd.f32 %v1154, %v1166
        %v1169 = vadd.f32 %v1155, %v1167
        %1170 = vrot.lane.b32.xlu0 %v1159, 8
        %v1171 = vpop.permute.xlu0 %1170
        %1172 = vrot.lane.b32.xlu0 %v1158, 8
        %v1173 = vpop.permute.xlu0 %1172
        %s1174 = sld [smem:[#allocation9 + $0xd]]
        %v1175 = vstv %s1174
        %v1176 = vmul.f32 %v1175, %v1171
        %v1177 = vmul.f32 %v1175, %v1173
        %v1178 = vadd.f32 %v1168, %v1176
        %v1179 = vadd.f32 %v1169, %v1177
        %s1180 = sld [smem:[#allocation9 + $0xe]]
        %v1181 = vstv %s1180
        %v1182 = vmul.f32 %v1181, %v1159
        %v1183 = vmul.f32 %v1181, %v1158
        %v1184 = vadd.f32 %v1178, %v1182
        %v1185 = vadd.f32 %v1179, %v1183
        %1186 = vrot.lane.b32.xlu0 %v1034, 16
        %v1187 = vpop.permute.xlu0 %1186
        %1188 = vrot.lane.b32.xlu0 %v1035, 16
        %v1189 = vpop.permute.xlu0 %1188
        %s1190 = sld [smem:[#allocation9 + $0xf]]
        %v1191 = vstv %s1190
        %v1192 = vmul.f32 %v1191, %v1187
        %v1193 = vmul.f32 %v1191, %v1189
        %v1194 = vadd.f32 %v1184, %v1192
        %v1195 = vadd.f32 %v1185, %v1193
        %1196 = vrot.lane.b32.xlu0 %v1034, 8
        %v1197 = vpop.permute.xlu0 %1196
        %1198 = vrot.lane.b32.xlu0 %v1035, 8
        %v1199 = vpop.permute.xlu0 %1198
        %s1200 = sld [smem:[#allocation9 + $0x10]]
        %v1201 = vstv %s1200
        %v1202 = vmul.f32 %v1201, %v1197
        %v1203 = vmul.f32 %v1201, %v1199
        %v1204 = vadd.f32 %v1194, %v1202
        %v1205 = vadd.f32 %v1195, %v1203
        %s1206 = sld [smem:[#allocation9 + $0x11]]
        %v1207 = vstv %s1206
        %v1208 = vmul.f32 %v1207, %v1034
        %v1209 = vmul.f32 %v1207, %v1035
        %v1210 = vadd.f32 %v1204, %v1208
        %v1211 = vadd.f32 %v1205, %v1209
        %v1212 = vtanh.pop %v1210
        %v1213 = vtanh.pop %v1211
        %v1214 = vmul.f32 %v1212, 0.5
        %v1215 = vmul.f32 %v1213, 0.5
        %v1216 = vadd.f32 %v1214, 0.5
        %v1217 = vadd.f32 %v1215, 0.5
        %vm1218 = vcmp.lt.s32.totalorder %v457, 14
        %vm1219 = vcmp.lt.s32.totalorder %v1024, 14
        %vm1220 = vcmp.lt.s32.totalorder %v1026, 112
        %vm1221 = vmand %vm1218, %vm1220
        %vm1222 = vmand %vm1219, %vm1220
        %v1223 = vsel %vm1221, %v1216, 0.0
        %v1224 = vsel %vm1222, %v1217, 0.0
        %s1225 = sld [smem:[#allocation12]]
        %v1226 = vstv %s1225
        %s1227 = sld [smem:[#allocation12 + $0x1]]
        %v1228 = vstv %s1227
        %s1229 = sld [smem:[#allocation12 + $0x2]]
        %v1230 = vstv %s1229
        %s1231 = sld [smem:[#allocation12 + $0x3]]
        %v1232 = vstv %s1231
        %s1233 = sld [smem:[#allocation12 + $0x4]]
        %v1234 = vstv %s1233
        %v1235 = vrot.slane %v1223, 6
        %v1236 = vrot.slane %v1224, 6
        %v1237 = vsel %vm1040, %v1235, %v1236
        %v1238 = vsel %vm1040, %v1236, %v1235
        %1239 = vrot.lane.b32.xlu0 %v1238, 16
        %v1240 = vpop.permute.xlu0 %1239
        %1241 = vrot.lane.b32.xlu0 %v1237, 16
        %v1242 = vpop.permute.xlu0 %1241
        %s1243 = sld [smem:[#allocation11]]
        %v1244 = vstv %s1243
        %v1245 = vmul.f32 %v1244, %v1240
        %v1246 = vmul.f32 %v1244, %v1242
        %v1247 = vadd.f32 %v1226, %v1245
        %v1248 = vadd.f32 %v1226, %v1246
        %s1249 = sld [smem:[#allocation11 + $0x9]]
        %v1250 = vstv %s1249
        %v1251 = vmul.f32 %v1250, %v1240
        %v1252 = vmul.f32 %v1250, %v1242
        %v1253 = vadd.f32 %v1228, %v1251
        %v1254 = vadd.f32 %v1228, %v1252
        %s1255 = sld [smem:[#allocation11 + $0x12]]
        %v1256 = vstv %s1255
        %v1257 = vmul.f32 %v1256, %v1240
        %v1258 = vmul.f32 %v1256, %v1242
        %v1259 = vadd.f32 %v1230, %v1257
        %v1260 = vadd.f32 %v1230, %v1258
        %s1261 = sld [smem:[#allocation11 + $0x1b]]
        %v1262 = vstv %s1261
        %v1263 = vmul.f32 %v1262, %v1240
        %v1264 = vmul.f32 %v1262, %v1242
        %v1265 = vadd.f32 %v1232, %v1263
        %v1266 = vadd.f32 %v1232, %v1264
        %s1267 = sld [smem:[#allocation11 + $0x24]]
        %v1268 = vstv %s1267
        %v1269 = vmul.f32 %v1268, %v1240
        %v1270 = vmul.f32 %v1268, %v1242
        %v1271 = vadd.f32 %v1234, %v1269
        %v1272 = vadd.f32 %v1234, %v1270
        %1273 = vrot.lane.b32.xlu0 %v1238, 8
        %v1274 = vpop.permute.xlu0 %1273
        %1275 = vrot.lane.b32.xlu0 %v1237, 8
        %v1276 = vpop.permute.xlu0 %1275
        %s1277 = sld [smem:[#allocation11 + $0x1]]
        %v1278 = vstv %s1277
        %v1279 = vmul.f32 %v1278, %v1274
        %v1280 = vmul.f32 %v1278, %v1276
        %v1281 = vadd.f32 %v1247, %v1279
        %v1282 = vadd.f32 %v1248, %v1280
        %s1283 = sld [smem:[#allocation11 + $0xa]]
        %v1284 = vstv %s1283
        %v1285 = vmul.f32 %v1284, %v1274
        %v1286 = vmul.f32 %v1284, %v1276
        %v1287 = vadd.f32 %v1253, %v1285
        %v1288 = vadd.f32 %v1254, %v1286
        %s1289 = sld [smem:[#allocation11 + $0x13]]
        %v1290 = vstv %s1289
        %v1291 = vmul.f32 %v1290, %v1274
        %v1292 = vmul.f32 %v1290, %v1276
        %v1293 = vadd.f32 %v1259, %v1291
        %v1294 = vadd.f32 %v1260, %v1292
        %s1295 = sld [smem:[#allocation11 + $0x1c]]
        %v1296 = vstv %s1295
        %v1297 = vmul.f32 %v1296, %v1274
        %v1298 = vmul.f32 %v1296, %v1276
        %v1299 = vadd.f32 %v1265, %v1297
        %v1300 = vadd.f32 %v1266, %v1298
        %s1301 = sld [smem:[#allocation11 + $0x25]]
        %v1302 = vstv %s1301
        %v1303 = vmul.f32 %v1302, %v1274
        %v1304 = vmul.f32 %v1302, %v1276
        %v1305 = vadd.f32 %v1271, %v1303
        %v1306 = vadd.f32 %v1272, %v1304
        %s1307 = sld [smem:[#allocation11 + $0x2]]
        %v1308 = vstv %s1307
        %v1309 = vmul.f32 %v1308, %v1238
        %v1310 = vmul.f32 %v1308, %v1237
        %v1311 = vadd.f32 %v1281, %v1309
        %v1312 = vadd.f32 %v1282, %v1310
        %s1313 = sld [smem:[#allocation11 + $0xb]]
        %v1314 = vstv %s1313
        %v1315 = vmul.f32 %v1314, %v1238
        %v1316 = vmul.f32 %v1314, %v1237
        %v1317 = vadd.f32 %v1287, %v1315
        %v1318 = vadd.f32 %v1288, %v1316
        %s1319 = sld [smem:[#allocation11 + $0x14]]
        %v1320 = vstv %s1319
        %v1321 = vmul.f32 %v1320, %v1238
        %v1322 = vmul.f32 %v1320, %v1237
        %v1323 = vadd.f32 %v1293, %v1321
        %v1324 = vadd.f32 %v1294, %v1322
        %s1325 = sld [smem:[#allocation11 + $0x1d]]
        %v1326 = vstv %s1325
        %v1327 = vmul.f32 %v1326, %v1238
        %v1328 = vmul.f32 %v1326, %v1237
        %v1329 = vadd.f32 %v1299, %v1327
        %v1330 = vadd.f32 %v1300, %v1328
        %s1331 = sld [smem:[#allocation11 + $0x26]]
        %v1332 = vstv %s1331
        %v1333 = vmul.f32 %v1332, %v1238
        %v1334 = vmul.f32 %v1332, %v1237
        %v1335 = vadd.f32 %v1305, %v1333
        %v1336 = vadd.f32 %v1306, %v1334
        %v1337 = vrot.slane %v1223, 7
        %v1338 = vrot.slane %v1224, 7
        %v1339 = vsel %vm1071, %v1337, %v1338
        %v1340 = vsel %vm1071, %v1338, %v1337
        %1341 = vrot.lane.b32.xlu0 %v1340, 16
        %v1342 = vpop.permute.xlu0 %1341
        %1343 = vrot.lane.b32.xlu0 %v1339, 16
        %v1344 = vpop.permute.xlu0 %1343
        %s1345 = sld [smem:[#allocation11 + $0x3]]
        %v1346 = vstv %s1345
        %v1347 = vmul.f32 %v1346, %v1342
        %v1348 = vmul.f32 %v1346, %v1344
        %v1349 = vadd.f32 %v1311, %v1347
        %v1350 = vadd.f32 %v1312, %v1348
        %s1351 = sld [smem:[#allocation11 + $0xc]]
        %v1352 = vstv %s1351
        %v1353 = vmul.f32 %v1352, %v1342
        %v1354 = vmul.f32 %v1352, %v1344
        %v1355 = vadd.f32 %v1317, %v1353
        %v1356 = vadd.f32 %v1318, %v1354
        %s1357 = sld [smem:[#allocation11 + $0x15]]
        %v1358 = vstv %s1357
        %v1359 = vmul.f32 %v1358, %v1342
        %v1360 = vmul.f32 %v1358, %v1344
        %v1361 = vadd.f32 %v1323, %v1359
        %v1362 = vadd.f32 %v1324, %v1360
        %s1363 = sld [smem:[#allocation11 + $0x1e]]
        %v1364 = vstv %s1363
        %v1365 = vmul.f32 %v1364, %v1342
        %v1366 = vmul.f32 %v1364, %v1344
        %v1367 = vadd.f32 %v1329, %v1365
        %v1368 = vadd.f32 %v1330, %v1366
        %s1369 = sld [smem:[#allocation11 + $0x27]]
        %v1370 = vstv %s1369
        %v1371 = vmul.f32 %v1370, %v1342
        %v1372 = vmul.f32 %v1370, %v1344
        %v1373 = vadd.f32 %v1335, %v1371
        %v1374 = vadd.f32 %v1336, %v1372
        %1375 = vrot.lane.b32.xlu0 %v1340, 8
        %v1376 = vpop.permute.xlu0 %1375
        %1377 = vrot.lane.b32.xlu0 %v1339, 8
        %v1378 = vpop.permute.xlu0 %1377
        %s1379 = sld [smem:[#allocation11 + $0x4]]
        %v1380 = vstv %s1379
        %v1381 = vmul.f32 %v1380, %v1376
        %v1382 = vmul.f32 %v1380, %v1378
        %v1383 = vadd.f32 %v1349, %v1381
        %v1384 = vadd.f32 %v1350, %v1382
        %s1385 = sld [smem:[#allocation11 + $0xd]]
        %v1386 = vstv %s1385
        %v1387 = vmul.f32 %v1386, %v1376
        %v1388 = vmul.f32 %v1386, %v1378
        %v1389 = vadd.f32 %v1355, %v1387
        %v1390 = vadd.f32 %v1356, %v1388
        %s1391 = sld [smem:[#allocation11 + $0x16]]
        %v1392 = vstv %s1391
        %v1393 = vmul.f32 %v1392, %v1376
        %v1394 = vmul.f32 %v1392, %v1378
        %v1395 = vadd.f32 %v1361, %v1393
        %v1396 = vadd.f32 %v1362, %v1394
        %s1397 = sld [smem:[#allocation11 + $0x1f]]
        %v1398 = vstv %s1397
        %v1399 = vmul.f32 %v1398, %v1376
        %v1400 = vmul.f32 %v1398, %v1378
        %v1401 = vadd.f32 %v1367, %v1399
        %v1402 = vadd.f32 %v1368, %v1400
        %s1403 = sld [smem:[#allocation11 + $0x28]]
        %v1404 = vstv %s1403
        %v1405 = vmul.f32 %v1404, %v1376
        %v1406 = vmul.f32 %v1404, %v1378
        %v1407 = vadd.f32 %v1373, %v1405
        %v1408 = vadd.f32 %v1374, %v1406
        %s1409 = sld [smem:[#allocation11 + $0x5]]
        %v1410 = vstv %s1409
        %v1411 = vmul.f32 %v1410, %v1340
        %v1412 = vmul.f32 %v1410, %v1339
        %v1413 = vadd.f32 %v1383, %v1411
        %v1414 = vadd.f32 %v1384, %v1412
        %s1415 = sld [smem:[#allocation11 + $0xe]]
        %v1416 = vstv %s1415
        %v1417 = vmul.f32 %v1416, %v1340
        %v1418 = vmul.f32 %v1416, %v1339
        %v1419 = vadd.f32 %v1389, %v1417
        %v1420 = vadd.f32 %v1390, %v1418
        %s1421 = sld [smem:[#allocation11 + $0x17]]
        %v1422 = vstv %s1421
        %v1423 = vmul.f32 %v1422, %v1340
        %v1424 = vmul.f32 %v1422, %v1339
        %v1425 = vadd.f32 %v1395, %v1423
        %v1426 = vadd.f32 %v1396, %v1424
        %s1427 = sld [smem:[#allocation11 + $0x20]]
        %v1428 = vstv %s1427
        %v1429 = vmul.f32 %v1428, %v1340
        %v1430 = vmul.f32 %v1428, %v1339
        %v1431 = vadd.f32 %v1401, %v1429
        %v1432 = vadd.f32 %v1402, %v1430
        %s1433 = sld [smem:[#allocation11 + $0x29]]
        %v1434 = vstv %s1433
        %v1435 = vmul.f32 %v1434, %v1340
        %v1436 = vmul.f32 %v1434, %v1339
        %v1437 = vadd.f32 %v1407, %v1435
        %v1438 = vadd.f32 %v1408, %v1436
        %1439 = vrot.lane.b32.xlu0 %v1223, 16
        %v1440 = vpop.permute.xlu0 %1439
        %1441 = vrot.lane.b32.xlu0 %v1224, 16
        %v1442 = vpop.permute.xlu0 %1441
        %s1443 = sld [smem:[#allocation11 + $0x6]]
        %v1444 = vstv %s1443
        %v1445 = vmul.f32 %v1444, %v1440
        %v1446 = vmul.f32 %v1444, %v1442
        %v1447 = vadd.f32 %v1413, %v1445
        %v1448 = vadd.f32 %v1414, %v1446
        %s1449 = sld [smem:[#allocation11 + $0xf]]
        %v1450 = vstv %s1449
        %v1451 = vmul.f32 %v1450, %v1440
        %v1452 = vmul.f32 %v1450, %v1442
        %v1453 = vadd.f32 %v1419, %v1451
        %v1454 = vadd.f32 %v1420, %v1452
        %s1455 = sld [smem:[#allocation11 + $0x18]]
        %v1456 = vstv %s1455
        %v1457 = vmul.f32 %v1456, %v1440
        %v1458 = vmul.f32 %v1456, %v1442
        %v1459 = vadd.f32 %v1425, %v1457
        %v1460 = vadd.f32 %v1426, %v1458
        %s1461 = sld [smem:[#allocation11 + $0x21]]
        %v1462 = vstv %s1461
        %v1463 = vmul.f32 %v1462, %v1440
        %v1464 = vmul.f32 %v1462, %v1442
        %v1465 = vadd.f32 %v1431, %v1463
        %v1466 = vadd.f32 %v1432, %v1464
        %s1467 = sld [smem:[#allocation11 + $0x2a]]
        %v1468 = vstv %s1467
        %v1469 = vmul.f32 %v1468, %v1440
        %v1470 = vmul.f32 %v1468, %v1442
        %v1471 = vadd.f32 %v1437, %v1469
        %v1472 = vadd.f32 %v1438, %v1470
        %1473 = vrot.lane.b32.xlu0 %v1223, 8
        %v1474 = vpop.permute.xlu0 %1473
        %1475 = vrot.lane.b32.xlu0 %v1224, 8
        %v1476 = vpop.permute.xlu0 %1475
        %s1477 = sld [smem:[#allocation11 + $0x7]]
        %v1478 = vstv %s1477
        %v1479 = vmul.f32 %v1478, %v1474
        %v1480 = vmul.f32 %v1478, %v1476
        %v1481 = vadd.f32 %v1447, %v1479
        %v1482 = vadd.f32 %v1448, %v1480
        %s1483 = sld [smem:[#allocation11 + $0x10]]
        %v1484 = vstv %s1483
        %v1485 = vmul.f32 %v1484, %v1474
        %v1486 = vmul.f32 %v1484, %v1476
        %v1487 = vadd.f32 %v1453, %v1485
        %v1488 = vadd.f32 %v1454, %v1486
        %s1489 = sld [smem:[#allocation11 + $0x19]]
        %v1490 = vstv %s1489
        %v1491 = vmul.f32 %v1490, %v1474
        %v1492 = vmul.f32 %v1490, %v1476
        %v1493 = vadd.f32 %v1459, %v1491
        %v1494 = vadd.f32 %v1460, %v1492
        %s1495 = sld [smem:[#allocation11 + $0x22]]
        %v1496 = vstv %s1495
        %v1497 = vmul.f32 %v1496, %v1474
        %v1498 = vmul.f32 %v1496, %v1476
        %v1499 = vadd.f32 %v1465, %v1497
        %v1500 = vadd.f32 %v1466, %v1498
        %s1501 = sld [smem:[#allocation11 + $0x2b]]
        %v1502 = vstv %s1501
        %v1503 = vmul.f32 %v1502, %v1474
        %v1504 = vmul.f32 %v1502, %v1476
        %v1505 = vadd.f32 %v1471, %v1503
        %v1506 = vadd.f32 %v1472, %v1504
        %s1507 = sld [smem:[#allocation11 + $0x8]]
        %v1508 = vstv %s1507
        %v1509 = vmul.f32 %v1508, %v1223
        %v1510 = vmul.f32 %v1508, %v1224
        %v1511 = vadd.f32 %v1481, %v1509
        %v1512 = vadd.f32 %v1482, %v1510
        %s1513 = sld [smem:[#allocation11 + $0x11]]
        %v1514 = vstv %s1513
        %v1515 = vmul.f32 %v1514, %v1223
        %v1516 = vmul.f32 %v1514, %v1224
        %v1517 = vadd.f32 %v1487, %v1515
        %v1518 = vadd.f32 %v1488, %v1516
        %s1519 = sld [smem:[#allocation11 + $0x1a]]
        %v1520 = vstv %s1519
        %v1521 = vmul.f32 %v1520, %v1223
        %v1522 = vmul.f32 %v1520, %v1224
        %v1523 = vadd.f32 %v1493, %v1521
        %v1524 = vadd.f32 %v1494, %v1522
        %s1525 = sld [smem:[#allocation11 + $0x23]]
        %v1526 = vstv %s1525
        %v1527 = vmul.f32 %v1526, %v1223
        %v1528 = vmul.f32 %v1526, %v1224
        %v1529 = vadd.f32 %v1499, %v1527
        %v1530 = vadd.f32 %v1500, %v1528
        %s1531 = sld [smem:[#allocation11 + $0x2c]]
        %v1532 = vstv %s1531
        %v1533 = vmul.f32 %v1532, %v1223
        %v1534 = vmul.f32 %v1532, %v1224
        %v1535 = vadd.f32 %v1505, %v1533
        %v1536 = vadd.f32 %v1506, %v1534
        %v1537 = vtanh.pop %v1511
        %v1538 = vtanh.pop %v1512
        %v1539 = vmul.f32 %v1537, 0.5
        %v1540 = vmul.f32 %v1538, 0.5
        %v1541 = vadd.f32 %v1539, 0.5
        %v1542 = vadd.f32 %v1540, 0.5
        %v1543 = vtanh.pop %v1517
        %v1544 = vtanh.pop %v1518
        %v1545 = vmul.f32 %v1543, 0.5
        %v1546 = vmul.f32 %v1544, 0.5
        %v1547 = vadd.f32 %v1545, 0.5
        %v1548 = vadd.f32 %v1546, 0.5
        %v1549 = vtanh.pop %v1523
        %v1550 = vtanh.pop %v1524
        %v1551 = vmul.f32 %v1549, 0.5
        %v1552 = vmul.f32 %v1550, 0.5
        %v1553 = vadd.f32 %v1551, 0.5
        %v1554 = vadd.f32 %v1552, 0.5
        %v1555 = vtanh.pop %v1529
        %v1556 = vtanh.pop %v1530
        %v1557 = vmul.f32 %v1555, 0.5
        %v1558 = vmul.f32 %v1556, 0.5
        %v1559 = vadd.f32 %v1557, 0.5
        %v1560 = vadd.f32 %v1558, 0.5
        %v1561 = vtanh.pop %v1535
        %v1562 = vtanh.pop %v1536
        %v1563 = vmul.f32 %v1561, 0.5
        %v1564 = vmul.f32 %v1562, 0.5
        %v1565 = vadd.f32 %v1563, 0.5
        %v1566 = vadd.f32 %v1564, 0.5
        %1567 = vst [vmem:[%s411] sm:$0xff] %v1541
        %1568 = vst [vmem:[%s411 + $0x8] sm:$0xff] %v1542
        %s1569 = scalar_lea.vmem %s411, 16
        %1570 = vst [vmem:[%s1569] sm:$0xff] %v1547
        %1571 = vst [vmem:[%s1569 + $0x8] sm:$0xff] %v1548
        %s1572 = scalar_lea.vmem %s411, 32
        %1573 = vst [vmem:[%s1572] sm:$0xff] %v1553
        %1574 = vst [vmem:[%s1572 + $0x8] sm:$0xff] %v1554
        %s1575 = scalar_lea.vmem %s411, 48
        %1576 = vst [vmem:[%s1575] sm:$0xff] %v1559
        %1577 = vst [vmem:[%s1575 + $0x8] sm:$0xff] %v1560
        %s1578 = scalar_lea.vmem %s411, 64
        %1579 = vst [vmem:[%s1578] sm:$0xff] %v1565
        %1580 = vst [vmem:[%s1578 + $0x8] sm:$0xff] %v1566
        %p1581 = scmp.lt.s32.totalorder %s26, 1
        %s1582 = scalar_select %p1581, %s26, 1
        %s1583 = smul.addr %s1582, 10
        %s1584 = smul.addr %s1583, 8
        %s1585 = scalar_lea.vmem %s9, %s1584
        // Predicated region
        $region81: #{autoencoder_forward_pallas.1} parent=55 // pred_check
          %p1586 = pneg %p238
        $region82: #{autoencoder_forward_pallas.1} parent=55 // pred_check_branch
          %1588 = sbr.rel (%p1586) target = $region84
        $region83: #{autoencoder_forward_pallas.1} parent=55 // pred_region
          _
        $region84: #{autoencoder_forward_pallas.1} parent=55 // pred_fallthru
          _
      $region56: #{autoencoder_forward_pallas.1} parent=5 // pred_fallthru
        _
      %p1589 = scmp.le.s32.totalorder 2, %s21
      // Predicated region
      $region85: #{autoencoder_forward_pallas.1} parent=5 // pred_check
        %p1590 = pneg %p1589
      $region86: #{autoencoder_forward_pallas.1} parent=5 // pred_check_branch
        %1592 = sbr.rel (%p1590) target = $region88
      $region87: #{autoencoder_forward_pallas.1} parent=5 // pred_region
        %s1593 = ssub.s32 %s21, 2
        // Predicated region
        $region89: #{autoencoder_forward_pallas.1} parent=87 // pred_check
          %p1594 = pneg %p244
        $region90: #{autoencoder_forward_pallas.1} parent=87 // pred_check_branch
          %1596 = sbr.rel (%p1594) target = $region92
        $region91: #{autoencoder_forward_pallas.1} parent=87 // pred_region
          %p1597 = scmp.lt.s32.totalorder %s27, 1
          %s1598 = scalar_select %p1597, %s27, 1
          %s1599 = smul.addr %s1598, 10
          %s1600 = smul.addr %s1599, 8
          %s1601 = scalar_lea.vmem %s9, %s1600
        $region92: #{autoencoder_forward_pallas.1} parent=87 // pred_fallthru
          _
      $region88: #{autoencoder_forward_pallas.1} parent=5 // pred_fallthru
        _
    $region6: #{autoencoder_forward_pallas.1} parent=1 // loop_footer
      %s25 = sadd.s32 1, %s21
    $region7: #{autoencoder_forward_pallas.1} parent=1 // loop_footer_branch
      %20 = sbr.rel target = $region3
    $region8: #{autoencoder_forward_pallas.1} parent=1 // loop_exit
      _
    %1602 = vsyncpa [#allocation5], 1
    %s1603 = scalar_lea.sflag [#allocation5], 1
    %1604 = vsyncpa %s1603, 1
    %1605 = vsyncpa [#allocation7], 1
    %1606 = vsyncpa [#allocation10], 1
    %1607 = vsyncpa [#allocation13], 1

</llo_original>
